<compile_context>
chip_gen: v5e
topology: v5e:2x2
jax: 0.10.0
libtpu: 0.0.40
codegen_flags: <defaults>
</compile_context>

<pallas_src>
import math

import jax
import jax.numpy as jnp
from jax.experimental import pallas as pl
from jax.experimental.pallas import tpu as pltpu

# ---- small config consistent with the module --------------------------------
BATCH = 2
SEQ = 16                                    # small, but >1 q-tile and >1 kv-tile
HIDDEN = 32
NUM_HEADS = 4
HEAD_DIM = HIDDEN // NUM_HEADS              # 8
NUM_KV_HEADS = 2
NUM_KV_GROUPS = NUM_HEADS // NUM_KV_HEADS   # 2
ROPE_THETA = 10000.0

# Toy flash tiles (must divide SEQ; multiples of 8).  Production values:
#   head_dim 128 so every last dim is lane-dense; TQ 128-256; TK 256-512 on
#   v5e/v7x (v7x: 64 MiB VMEM -> smaller KV tiles + single-buffered bf16 weights),
#   TK 512-1024 on v6e with vmem_limit_bytes raised toward the full 128 MiB.
TILE_Q = 8
TILE_K = 8


# ---------------------------------------------------------------------------
# Fused flash-attention kernel: one (batch, q-tile, kv-head, kv-tile) step
# ---------------------------------------------------------------------------
def _fused_attn_kernel(xq_ref, hk_ref, wkv_ref, wo_ref,
                       cosq_ref, sinq_ref, cosk_ref, sink_ref,
                       o_ref,
                       m_scr, l_scr, acc_scr, slab_scr, out_acc):
    """Shapes seen by the kernel:
       xq_ref  (G, TQ, Hd)  queries of the G heads sharing this kv head
       hk_ref  (TK, D)      hidden states of this kv tile (K/V projected here)
       wkv_ref (D, 2*Hd)    merged [k|v] projection weight of this kv head (bf16)
       wo_ref  (G*Hd, D)    o_proj rows for this kv head's G query heads (bf16)
       cos/sin (TQ, Hd)/(TK, Hd)  RoPE tables (sin has rotate_half sign folded in)
       o_ref   (TQ, D)      output rows for this (batch, q-tile)
    """
    qi = pl.program_id(1)
    g = pl.program_id(2)
    ki = pl.program_id(3)
    n_kv_heads = pl.num_programs(2)
    n_kv_tiles = pl.num_programs(3)

    G, TQ, Hd = xq_ref.shape
    TK = hk_ref.shape[0]
    half = Hd // 2
    inv_sqrt_d = jnp.float32(1.0 / math.sqrt(Hd))

    # --- init resident accumulators ------------------------------------------
    @pl.when(jnp.logical_and(g == 0, ki == 0))
    def _():
        out_acc[...] = jnp.zeros(out_acc.shape, jnp.float32)

    @pl.when(ki == 0)
    def _():
        m_scr[...] = jnp.full(m_scr.shape, -jnp.inf, jnp.float32)
        l_scr[...] = jnp.zeros(l_scr.shape, jnp.float32)
        acc_scr[...] = jnp.zeros(acc_scr.shape, jnp.float32)

    # --- RoPE: t*cos + roll(t, Hd/2)*sin_signed (sign folded into sin) -------
    def rope(t, cos, sin_signed):
        if Hd >= 128:                                   # production path
            rolled = pltpu.roll(t, shift=half, axis=-1)  # XLU slot, off the VALU
        else:                                           # tiny-head fallback
            rolled = jnp.concatenate([t[..., half:], t[..., :half]], axis=-1)
        return t * cos + rolled * sin_signed

    # --- K/V projection for this kv head & kv tile (bf16 MXU, f32 accum) -----
    # NOTE: recomputed per q tile.  At production shapes either precompute K/V in
    # a separate projection pass or cache the RoPE'd tiles in a persistent VMEM
    # scratch filled when qi == 0 (which requires the q axis to be "arbitrary").
    kv = jnp.dot(hk_ref[...].astype(jnp.bfloat16), wkv_ref[...],
                 preferred_element_type=jnp.float32)                 # (TK, 2*Hd)
    k_rot = rope(kv[:, :Hd], cosk_ref[...], sink_ref[...]).astype(jnp.bfloat16)
    v_bf = kv[:, Hd:].astype(jnp.bfloat16)                            # (TK, Hd)

    # --- queries: 1/sqrt(Hd) folded in before RoPE (RoPE is linear) ----------
    q = xq_ref[...].astype(jnp.float32) * inv_sqrt_d                  # (G, TQ, Hd)
    q_rot = rope(q, cosq_ref[...][None], sinq_ref[...][None])         # f32
    q2 = q_rot.reshape(G * TQ, Hd).astype(jnp.bfloat16)

    # --- scores + in-kernel causal mask (no HBM mask stream) -----------------
    s = jax.lax.dot_general(q2, k_rot, (((1,), (1,)), ((), ())),
                            preferred_element_type=jnp.float32)
    s = s.reshape(G, TQ, TK)
    q_pos = qi * TQ + jax.lax.broadcasted_iota(jnp.int32, (TQ, TK), 0)
    k_pos = ki * TK + jax.lax.broadcasted_iota(jnp.int32, (TQ, TK), 1)
    bias = jnp.where(k_pos <= q_pos, jnp.float32(0.0), jnp.float32(-1e30))
    s = s + bias[None]                                                # f32 scores

    # --- online softmax update (f32 stats) ------------------------------------
    m_prev = m_scr[...]
    m_new = jnp.maximum(m_prev, jnp.max(s, axis=-1, keepdims=True))
    alpha = jnp.exp(m_prev - m_new)
    p = jnp.exp(s - m_new)                                            # (G, TQ, TK)
    l_scr[...] = alpha * l_scr[...] + jnp.sum(p, axis=-1, keepdims=True)
    p2 = p.reshape(G * TQ, TK).astype(jnp.bfloat16)                   # bf16 for MXU
    pv = jnp.dot(p2, v_bf, preferred_element_type=jnp.float32).reshape(G, TQ, Hd)
    acc_scr[...] = alpha * acc_scr[...] + pv
    m_scr[...] = m_new

    # --- finalize this kv head: normalize, slab-store, partial o_proj --------
    @pl.when(ki == n_kv_tiles - 1)
    def _():
        # Exact divide for torch.softmax parity; pl.reciprocal(approx=True) is
        # the EUP fast path if ~1e-3 relative error is acceptable.
        attn = acc_scr[...] / l_scr[...]                              # (G, TQ, Hd)
        for r in range(G):                                            # static unroll
            slab_scr[:, r * Hd:(r + 1) * Hd] = attn[r].astype(jnp.bfloat16)
        out_acc[...] += jnp.dot(slab_scr[...], wo_ref[...],
                                preferred_element_type=jnp.float32)   # (TQ, D)

    @pl.when(jnp.logical_and(g == n_kv_heads - 1, ki == n_kv_tiles - 1))
    def _():
        o_ref[...] = out_acc[...].astype(o_ref.dtype)


def fused_attention(hidden_states, x_q, wkv, wo, cos, sin_signed):
    B, S, D = hidden_states.shape
    KV = wkv.shape[0]
    G = x_q.shape[2]
    Hd = cos.shape[-1]
    TQ, TK = TILE_Q, TILE_K
    assert S % TQ == 0 and S % TK == 0
    n_q, n_k = S // TQ, S // TK
    grid = (B, n_q, KV, n_k)

    # Advisory cost estimate so XLA schedules around the fused kernel.
    flops = (2 * B * n_q * KV * n_k * TK * D * (2 * Hd)      # fused K/V projection
             + 4 * B * n_q * KV * n_k * G * TQ * TK * Hd     # QK^T + PV
             + 2 * B * n_q * KV * TQ * (G * Hd) * D)         # o_proj
    transcendentals = B * n_q * KV * n_k * G * TQ * (TK + 1)
    bytes_accessed = int(
        x_q.size * x_q.dtype.itemsize
        + hidden_states.size * hidden_states.dtype.itemsize
        + wkv.size * wkv.dtype.itemsize + wo.size * wo.dtype.itemsize
        + 2 * (cos.size + sin_signed.size) * 4
        + B * S * D * 4)

    return pl.pallas_call(
        _fused_attn_kernel,
        out_shape=jax.ShapeDtypeStruct((B, S, D), hidden_states.dtype),
        grid=grid,
        in_specs=[
            # (B, KV, G, S, Hd) query slab -> (G, TQ, Hd) block
            pl.BlockSpec((None, None, G, TQ, Hd), lambda b, q, g, k: (b, g, 0, q, 0)),
            # (B, S, D) hidden states for the K/V projection of this kv tile
            pl.BlockSpec((None, TK, D), lambda b, q, g, k: (b, k, 0)),
            # (KV, D, 2*Hd) merged bf16 K/V weight, one kv head per step
            pl.BlockSpec((None, D, 2 * Hd), lambda b, q, g, k: (g, 0, 0)),
            # (H*Hd, D) bf16 o_proj weight, rows of this kv head's G query heads
            pl.BlockSpec((G * Hd, D), lambda b, q, g, k: (g, 0)),
            # RoPE tables: q-tile rows and k-tile rows of the same (B, S, Hd) arrays
            pl.BlockSpec((None, TQ, Hd), lambda b, q, g, k: (b, q, 0)),
            pl.BlockSpec((None, TQ, Hd), lambda b, q, g, k: (b, q, 0)),
            pl.BlockSpec((None, TK, Hd), lambda b, q, g, k: (b, k, 0)),
            pl.BlockSpec((None, TK, Hd), lambda b, q, g, k: (b, k, 0)),
        ],
        out_specs=pl.BlockSpec((None, TQ, D), lambda b, q, g, k: (b, q, 0)),
        scratch_shapes=[
            pltpu.VMEM((G, TQ, 1), jnp.float32),      # running max m
            pltpu.VMEM((G, TQ, 1), jnp.float32),      # running denom l
            pltpu.VMEM((G, TQ, Hd), jnp.float32),     # attention numerator acc
            pltpu.VMEM((TQ, G * Hd), jnp.bfloat16),   # lane-dense head slab -> o_proj
            pltpu.VMEM((TQ, D), jnp.float32),         # o_proj accumulator across kv heads
        ],
        compiler_params=pltpu.CompilerParams(
            # B * n_q parallel steps feed both v7x TensorCores and let BlockSpec
            # double-buffering hide DMA; kv head / kv tile are the resident-
            # accumulator (reduction) axes.
            dimension_semantics=("parallel", "parallel", "arbitrary", "arbitrary"),
            vmem_limit_bytes=32 * 1024 * 1024,   # tune per generation (<= ~48 MiB v7x)
        ),
        cost_estimate=pl.CostEstimate(flops=flops, transcendentals=transcendentals,
                                      bytes_accessed=bytes_accessed),
    )(x_q, hidden_states, wkv, wo, cos, sin_signed, cos, sin_signed)


# ---------------------------------------------------------------------------
# Glue (plain JAX): RoPE tables, wrapper-side layout, parameter setup
# ---------------------------------------------------------------------------
def rotary_cos_sin(position_ids, head_dim, theta):
    """position_ids: (B, S) -> cos, sin of shape (B, S, head_dim)."""
    inv_freq = 1.0 / (theta ** (jnp.arange(0, head_dim, 2, dtype=jnp.float32) / head_dim))
    freqs = position_ids[..., None].astype(jnp.float32) * inv_freq[None, None, :]
    emb = jnp.concatenate([freqs, freqs], axis=-1)
    return jnp.cos(emb), jnp.sin(emb)


def internlm3_attention_forward(hidden_states, params, position_ids):
    B, S, _ = hidden_states.shape
    KV, G, Hd = NUM_KV_HEADS, NUM_KV_GROUPS, HEAD_DIM
    cos, sin = rotary_cos_sin(position_ids, Hd, ROPE_THETA)
    # Fold the rotate_half sign into sin so the kernel's RoPE is a pure rotation.
    sign = jnp.concatenate([-jnp.ones(Hd // 2, jnp.float32),
                            jnp.ones(Hd // 2, jnp.float32)])
    sin_signed = sin * sign
    # Query slab (B, KV, G, S, Hd): pure layout done once per call by XLA so the
    # kernel never does per-head sub-lane slicing / sublane concatenation.
    x_q = jnp.transpose(hidden_states.reshape(B, S, KV, G, Hd), (0, 2, 3, 1, 4))
    # TODO(synk): past_key_value cache update, attention_dropout (training),
    # output_attentions and arbitrary (non-causal / padding) additive
    # attention_mask tensors are not implemented; the standard causal mask is
    # generated inside the kernel.
    return fused_attention(hidden_states, x_q, params["wkv_kernel"],
                           params["wo_kernel"], cos, sin_signed)


def init_params(key):
    k1, k2, k3 = jax.random.split(key, 3)
    scale = 0.02
    # stored as (in_features, out_features) == transposed PyTorch nn.Linear weight
    wqk = scale * jax.random.normal(k1, (HIDDEN, NUM_KV_HEADS * HEAD_DIM), jnp.float32)
    wv = scale * jax.random.normal(k2, (HIDDEN, NUM_KV_HEADS * HEAD_DIM), jnp.float32)
    wo = scale * jax.random.normal(k3, (NUM_HEADS * HEAD_DIM, HIDDEN), jnp.float32)
    # Kernel-side weights: merged [k|v] per kv head, reshaped and bf16-cast ONCE
    # at init (hoisted out of the per-call path per the perf review).
    wkv = jnp.concatenate(
        [wqk.reshape(HIDDEN, NUM_KV_HEADS, HEAD_DIM),
         wv.reshape(HIDDEN, NUM_KV_HEADS, HEAD_DIM)], axis=-1)        # (D, KV, 2*Hd)
    wkv = jnp.transpose(wkv, (1, 0, 2)).astype(jnp.bfloat16)          # (KV, D, 2*Hd)
    return {"wqk": wqk, "wv": wv, "wo": wo,
            "wkv_kernel": wkv, "wo_kernel": wo.astype(jnp.bfloat16)}


# ---------------------------------------------------------------------------
# Pure-JAX reference (mirrors the PyTorch forward) for sanity checking
# ---------------------------------------------------------------------------
def reference_forward(hidden_states, params, position_ids, attention_mask):
    B, S, _ = hidden_states.shape
    H, Hd, KV, G = NUM_HEADS, HEAD_DIM, NUM_KV_HEADS, NUM_KV_GROUPS
    qk = (hidden_states @ params["wqk"]).reshape(B, S, KV, Hd).transpose(0, 2, 1, 3)
    v = (hidden_states @ params["wv"]).reshape(B, S, KV, Hd).transpose(0, 2, 1, 3)
    x = hidden_states.reshape(B, S, H, Hd).transpose(0, 2, 1, 3)
    cos, sin = rotary_cos_sin(position_ids, Hd, ROPE_THETA)
    cos = cos[:, None]
    sin = sin[:, None]

    def rot_half(t):
        return jnp.concatenate([-t[..., Hd // 2:], t[..., :Hd // 2]], axis=-1)

    x = x * cos + rot_half(x) * sin
    qk = qk * cos + rot_half(qk) * sin
    qk = jnp.repeat(qk, G, axis=1)
    v = jnp.repeat(v, G, axis=1)
    w = jnp.einsum("bhqd,bhkd->bhqk", x, qk) / math.sqrt(Hd) + attention_mask
    w = jax.nn.softmax(w.astype(jnp.float32), axis=-1)
    o = jnp.einsum("bhqk,bhkd->bhqd", w, v)
    o = o.transpose(0, 2, 1, 3).reshape(B, S, H * Hd)
    return o @ params["wo"]


if __name__ == "__main__":
    key = jax.random.PRNGKey(0)
    kp, kx = jax.random.split(key)
    params = init_params(kp)

    hidden_states = jax.random.normal(kx, (BATCH, SEQ, HIDDEN), jnp.float32)
    position_ids = jnp.broadcast_to(jnp.arange(SEQ, dtype=jnp.int32), (BATCH, SEQ))

    fwd = jax.jit(internlm3_attention_forward)
    out = jax.block_until_ready(fwd(hidden_states, params, position_ids))

    # Reference uses the standard HF-style additive causal mask and f32 weights.
    neg = jnp.finfo(jnp.float32).min
    tri = jnp.tril(jnp.ones((SEQ, SEQ), dtype=bool))
    attention_mask = jnp.where(tri, 0.0, neg).astype(jnp.float32)
    attention_mask = jnp.broadcast_to(attention_mask, (BATCH, 1, SEQ, SEQ))
    ref = reference_forward(hidden_states, params, position_ids, attention_mask)

    assert out.shape == (BATCH, SEQ, HIDDEN)
    assert jnp.allclose(out, ref, rtol=2e-2, atol=2e-2), "mismatch vs reference"
    print("KERNEL_OK")
</pallas_src>

<mosaic_0001>
module attributes {stable_mosaic.version = 11 : i64} {
  func.func @_fused_attn_kernel(%arg0: i32, %arg1: i32, %arg2: i32, %arg3: i32, %arg4: memref<1x1x2x8x8xf32, #tpu.memory_space<vmem>>, %arg5: memref<1x8x32xf32, #tpu.memory_space<vmem>>, %arg6: memref<1x32x16xbf16, #tpu.memory_space<vmem>>, %arg7: memref<16x32xbf16, #tpu.memory_space<vmem>>, %arg8: memref<1x8x8xf32, #tpu.memory_space<vmem>>, %arg9: memref<1x8x8xf32, #tpu.memory_space<vmem>>, %arg10: memref<1x8x8xf32, #tpu.memory_space<vmem>>, %arg11: memref<1x8x8xf32, #tpu.memory_space<vmem>>, %arg12: memref<1x8x32xf32, #tpu.memory_space<vmem>>, %arg13: memref<2x8x1xf32, #tpu.memory_space<vmem>>, %arg14: memref<2x8x1xf32, #tpu.memory_space<vmem>>, %arg15: memref<2x8x8xf32, #tpu.memory_space<vmem>>, %arg16: memref<8x16xbf16, #tpu.memory_space<vmem>>, %arg17: memref<8x32xf32, #tpu.memory_space<vmem>>) attributes {dimension_semantics = [#tpu.dimension_semantics<parallel>, #tpu.dimension_semantics<parallel>, #tpu.dimension_semantics<arbitrary>, #tpu.dimension_semantics<arbitrary>], iteration_bounds = array<i64: 2, 2, 2, 2>, scalar_prefetch = 0 : i64, scratch_operands = 5 : i64, tpu.core_type = #tpu.core_type<tc>, window_params = [{transform_indices = @transform_0, window_bounds = array<i64: 1, 1, 2, 8, 8>}, {transform_indices = @transform_1, window_bounds = array<i64: 1, 8, 32>}, {transform_indices = @transform_2, window_bounds = array<i64: 1, 32, 16>}, {transform_indices = @transform_3, window_bounds = array<i64: 16, 32>}, {transform_indices = @transform_4, window_bounds = array<i64: 1, 8, 8>}, {transform_indices = @transform_5, window_bounds = array<i64: 1, 8, 8>}, {transform_indices = @transform_6, window_bounds = array<i64: 1, 8, 8>}, {transform_indices = @transform_7, window_bounds = array<i64: 1, 8, 8>}, {transform_indices = @transform_8, window_bounds = array<i64: 1, 8, 32>}]} {
    %c0_i32 = arith.constant 0 : i32
    %0 = arith.cmpi eq, %arg2, %c0_i32 : i32
    %c0_i32_0 = arith.constant 0 : i32
    %1 = arith.cmpi eq, %arg3, %c0_i32_0 : i32
    %2 = arith.andi %0, %1 : i1
    %3 = arith.extui %2 : i1 to i32
    %c0_i32_1 = arith.constant 0 : i32
    %4 = arith.cmpi ne, %3, %c0_i32_1 : i32
    scf.if %4 {
      %cst_56 = arith.constant 0.000000e+00 : f32
      %98 = vector.broadcast %cst_56 : f32 to vector<8x32xf32>
      %c0_57 = arith.constant 0 : index
      %c0_58 = arith.constant 0 : index
      %99 = vector.load %arg17[%c0_57, %c0_58] : memref<8x32xf32, #tpu.memory_space<vmem>>, vector<8x32xf32>
      tpu.vector_store %arg17[%c0_57, %c0_58], %98 {strides = array<i32>} : memref<8x32xf32, #tpu.memory_space<vmem>>, vector<8x32xf32>,
    } else {
    }
    %c0_i32_2 = arith.constant 0 : i32
    %5 = arith.cmpi eq, %arg3, %c0_i32_2 : i32
    %6 = arith.extui %5 : i1 to i32
    %c0_i32_3 = arith.constant 0 : i32
    %7 = arith.cmpi ne, %6, %c0_i32_3 : i32
    scf.if %7 {
      %cst_56 = arith.constant 0xFF800000 : f32
      %98 = vector.broadcast %cst_56 : f32 to vector<2x8x1xf32>
      %c0_57 = arith.constant 0 : index
      %c0_58 = arith.constant 0 : index
      %c0_59 = arith.constant 0 : index
      %99 = vector.load %arg13[%c0_57, %c0_58, %c0_59] : memref<2x8x1xf32, #tpu.memory_space<vmem>>, vector<2x8x1xf32>
      tpu.vector_store %arg13[%c0_57, %c0_58, %c0_59], %98 {strides = array<i32>} : memref<2x8x1xf32, #tpu.memory_space<vmem>>, vector<2x8x1xf32>,
      %cst_60 = arith.constant 0.000000e+00 : f32
      %100 = vector.broadcast %cst_60 : f32 to vector<2x8x1xf32>
      %c0_61 = arith.constant 0 : index
      %c0_62 = arith.constant 0 : index
      %c0_63 = arith.constant 0 : index
      %101 = vector.load %arg14[%c0_61, %c0_62, %c0_63] : memref<2x8x1xf32, #tpu.memory_space<vmem>>, vector<2x8x1xf32>
      tpu.vector_store %arg14[%c0_61, %c0_62, %c0_63], %100 {strides = array<i32>} : memref<2x8x1xf32, #tpu.memory_space<vmem>>, vector<2x8x1xf32>,
      %cst_64 = arith.constant 0.000000e+00 : f32
      %102 = vector.broadcast %cst_64 : f32 to vector<2x8x8xf32>
      %c0_65 = arith.constant 0 : index
      %c0_66 = arith.constant 0 : index
      %c0_67 = arith.constant 0 : index
      %103 = vector.load %arg15[%c0_65, %c0_66, %c0_67] : memref<2x8x8xf32, #tpu.memory_space<vmem>>, vector<2x8x8xf32>
      tpu.vector_store %arg15[%c0_65, %c0_66, %c0_67], %102 {strides = array<i32>} : memref<2x8x8xf32, #tpu.memory_space<vmem>>, vector<2x8x8xf32>,
    } else {
    }
    %c0 = arith.constant 0 : index
    %c0_4 = arith.constant 0 : index
    %c0_5 = arith.constant 0 : index
    %8 = vector.load %arg5[%c0, %c0_4, %c0_5] : memref<1x8x32xf32, #tpu.memory_space<vmem>>, vector<1x8x32xf32>
    %9 = vector.shape_cast %8 : vector<1x8x32xf32> to vector<8x32xf32>
    %10 = arith.truncf %9 : vector<8x32xf32> to vector<8x32xbf16>
    %c0_6 = arith.constant 0 : index
    %c0_7 = arith.constant 0 : index
    %c0_8 = arith.constant 0 : index
    %11 = vector.load %arg6[%c0_6, %c0_7, %c0_8] : memref<1x32x16xbf16, #tpu.memory_space<vmem>>, vector<1x32x16xbf16>
    %12 = vector.shape_cast %11 : vector<1x32x16xbf16> to vector<32x16xbf16>
    %cst = arith.constant dense<0.000000e+00> : vector<8x16xf32>
    %13 = tpu.matmul %10, %12, %cst {dimension_numbers = #tpu.dot_dimension_numbers<[1], [0], [0], [1], [0, 0, 1, 1], [], []>} : vector<8x32xbf16>, vector<32x16xbf16>, vector<8x16xf32> -> vector<8x16xf32>
    %14 = vector.extract_strided_slice %13 {offsets = [0, 0], sizes = [8, 8], strides = [1, 1]} : vector<8x16xf32> to vector<8x8xf32>
    %c0_9 = arith.constant 0 : index
    %c0_10 = arith.constant 0 : index
    %c0_11 = arith.constant 0 : index
    %15 = vector.load %arg10[%c0_9, %c0_10, %c0_11] : memref<1x8x8xf32, #tpu.memory_space<vmem>>, vector<1x8x8xf32>
    %16 = vector.shape_cast %15 : vector<1x8x8xf32> to vector<8x8xf32>
    %c0_12 = arith.constant 0 : index
    %c0_13 = arith.constant 0 : index
    %c0_14 = arith.constant 0 : index
    %17 = vector.load %arg11[%c0_12, %c0_13, %c0_14] : memref<1x8x8xf32, #tpu.memory_space<vmem>>, vector<1x8x8xf32>
    %18 = vector.shape_cast %17 : vector<1x8x8xf32> to vector<8x8xf32>
    %19 = vector.extract_strided_slice %14 {offsets = [0, 4], sizes = [8, 4], strides = [1, 1]} : vector<8x8xf32> to vector<8x4xf32>
    %20 = vector.extract_strided_slice %14 {offsets = [0, 0], sizes = [8, 4], strides = [1, 1]} : vector<8x8xf32> to vector<8x4xf32>
    %21 = tpu.concatenate %19, %20 in 1 : vector<8x4xf32>, vector<8x4xf32> -> vector<8x8xf32>
    %22 = arith.mulf %14, %16 : vector<8x8xf32>
    %23 = arith.mulf %21, %18 : vector<8x8xf32>
    %24 = arith.addf %22, %23 : vector<8x8xf32>
    %25 = arith.truncf %24 : vector<8x8xf32> to vector<8x8xbf16>
    %26 = vector.extract_strided_slice %13 {offsets = [0, 8], sizes = [8, 8], strides = [1, 1]} : vector<8x16xf32> to vector<8x8xf32>
    %27 = arith.truncf %26 : vector<8x8xf32> to vector<8x8xbf16>
    %c0_15 = arith.constant 0 : index
    %c0_16 = arith.constant 0 : index
    %c0_17 = arith.constant 0 : index
    %c0_18 = arith.constant 0 : index
    %c0_19 = arith.constant 0 : index
    %28 = vector.load %arg4[%c0_15, %c0_16, %c0_17, %c0_18, %c0_19] : memref<1x1x2x8x8xf32, #tpu.memory_space<vmem>>, vector<1x1x2x8x8xf32>
    %29 = vector.shape_cast %28 : vector<1x1x2x8x8xf32> to vector<2x8x8xf32>
    %cst_20 = arith.constant 0.353553385 : f32
    %30 = vector.broadcast %cst_20 : f32 to vector<2x8x8xf32>
    %31 = arith.mulf %29, %30 : vector<2x8x8xf32>
    %c0_21 = arith.constant 0 : index
    %c0_22 = arith.constant 0 : index
    %c0_23 = arith.constant 0 : index
    %32 = vector.load %arg8[%c0_21, %c0_22, %c0_23] : memref<1x8x8xf32, #tpu.memory_space<vmem>>, vector<1x8x8xf32>
    %33 = vector.shape_cast %32 : vector<1x8x8xf32> to vector<8x8xf32>
    %34 = vector.shape_cast %33 : vector<8x8xf32> to vector<1x8x8xf32>
    %c0_24 = arith.constant 0 : index
    %c0_25 = arith.constant 0 : index
    %c0_26 = arith.constant 0 : index
    %35 = vector.load %arg9[%c0_24, %c0_25, %c0_26] : memref<1x8x8xf32, #tpu.memory_space<vmem>>, vector<1x8x8xf32>
    %36 = vector.shape_cast %35 : vector<1x8x8xf32> to vector<8x8xf32>
    %37 = vector.shape_cast %36 : vector<8x8xf32> to vector<1x8x8xf32>
    %38 = vector.extract_strided_slice %31 {offsets = [0, 0, 4], sizes = [2, 8, 4], strides = [1, 1, 1]} : vector<2x8x8xf32> to vector<2x8x4xf32>
    %39 = vector.extract_strided_slice %31 {offsets = [0, 0, 0], sizes = [2, 8, 4], strides = [1, 1, 1]} : vector<2x8x8xf32> to vector<2x8x4xf32>
    %40 = tpu.concatenate %38, %39 in 2 : vector<2x8x4xf32>, vector<2x8x4xf32> -> vector<2x8x8xf32>
    %41 = vector.broadcast %34 : vector<1x8x8xf32> to vector<2x8x8xf32>
    %42 = arith.mulf %31, %41 : vector<2x8x8xf32>
    %43 = vector.broadcast %37 : vector<1x8x8xf32> to vector<2x8x8xf32>
    %44 = arith.mulf %40, %43 : vector<2x8x8xf32>
    %45 = arith.addf %42, %44 : vector<2x8x8xf32>
    %46 = vector.shape_cast %45 : vector<2x8x8xf32> to vector<16x8xf32>
    %47 = arith.truncf %46 : vector<16x8xf32> to vector<16x8xbf16>
    %cst_27 = arith.constant dense<0.000000e+00> : vector<16x8xf32>
    %48 = tpu.matmul %47, %25, %cst_27 {dimension_numbers = #tpu.dot_dimension_numbers<[1], [1], [0], [0], [0, 0, 1, 0], [], []>} : vector<16x8xbf16>, vector<8x8xbf16>, vector<16x8xf32> -> vector<16x8xf32>
    %49 = vector.shape_cast %48 : vector<16x8xf32> to vector<2x8x8xf32>
    %c8_i32 = arith.constant 8 : i32
    %50 = arith.muli %arg1, %c8_i32 : i32
    %51 = tpu.iota {dimensions = array<i32: 0>} : vector<8x8xi32>
    %52 = vector.broadcast %50 : i32 to vector<8x8xi32>
    %53 = arith.addi %52, %51 : vector<8x8xi32>
    %c8_i32_28 = arith.constant 8 : i32
    %54 = arith.muli %arg3, %c8_i32_28 : i32
    %55 = tpu.iota {dimensions = array<i32: 1>} : vector<8x8xi32>
    %56 = vector.broadcast %54 : i32 to vector<8x8xi32>
    %57 = arith.addi %56, %55 : vector<8x8xi32>
    %58 = arith.cmpi sle, %57, %53 : vector<8x8xi32>
    %cst_29 = arith.constant 0.000000e+00 : f32
    %cst_30 = arith.constant -1.000000e+30 : f32
    %59 = vector.broadcast %cst_29 : f32 to vector<8x8xf32>
    %60 = vector.broadcast %cst_30 : f32 to vector<8x8xf32>
    %61 = arith.select %58, %59, %60 : vector<8x8xi1>, vector<8x8xf32>
    %62 = vector.shape_cast %61 : vector<8x8xf32> to vector<1x8x8xf32>
    %63 = vector.broadcast %62 : vector<1x8x8xf32> to vector<2x8x8xf32>
    %64 = arith.addf %49, %63 : vector<2x8x8xf32>
    %c0_31 = arith.constant 0 : index
    %c0_32 = arith.constant 0 : index
    %c0_33 = arith.constant 0 : index
    %65 = vector.load %arg13[%c0_31, %c0_32, %c0_33] : memref<2x8x1xf32, #tpu.memory_space<vmem>>, vector<2x8x1xf32>
    %cst_34 = arith.constant dense<0xFF800000> : vector<2x8xf32>
    %66 = vector.multi_reduction <maximumf>, %64, %cst_34 [2] : vector<2x8x8xf32> to vector<2x8xf32>
    %67 = vector.shape_cast %66 : vector<2x8xf32> to vector<2x8x1xf32>
    %68 = arith.maximumf %65, %67 : vector<2x8x1xf32>
    %69 = arith.subf %65, %68 : vector<2x8x1xf32>
    %70 = math.exp %69 : vector<2x8x1xf32>
    %71 = vector.broadcast %68 : vector<2x8x1xf32> to vector<2x8x8xf32>
    %72 = arith.subf %64, %71 : vector<2x8x8xf32>
    %73 = math.exp %72 : vector<2x8x8xf32>
    %c0_35 = arith.constant 0 : index
    %c0_36 = arith.constant 0 : index
    %c0_37 = arith.constant 0 : index
    %74 = vector.load %arg14[%c0_35, %c0_36, %c0_37] : memref<2x8x1xf32, #tpu.memory_space<vmem>>, vector<2x8x1xf32>
    %75 = arith.mulf %70, %74 : vector<2x8x1xf32>
    %cst_38 = arith.constant dense<0.000000e+00> : vector<2x8xf32>
    %76 = vector.multi_reduction <add>, %73, %cst_38 [2] : vector<2x8x8xf32> to vector<2x8xf32>
    %77 = vector.shape_cast %76 : vector<2x8xf32> to vector<2x8x1xf32>
    %78 = arith.addf %75, %77 : vector<2x8x1xf32>
    %c0_39 = arith.constant 0 : index
    %c0_40 = arith.constant 0 : index
    %c0_41 = arith.constant 0 : index
    %79 = vector.load %arg14[%c0_39, %c0_40, %c0_41] : memref<2x8x1xf32, #tpu.memory_space<vmem>>, vector<2x8x1xf32>
    tpu.vector_store %arg14[%c0_39, %c0_40, %c0_41], %78 {strides = array<i32>} : memref<2x8x1xf32, #tpu.memory_space<vmem>>, vector<2x8x1xf32>,
    %80 = vector.shape_cast %73 : vector<2x8x8xf32> to vector<16x8xf32>
    %81 = arith.truncf %80 : vector<16x8xf32> to vector<16x8xbf16>
    %cst_42 = arith.constant dense<0.000000e+00> : vector<16x8xf32>
    %82 = tpu.matmul %81, %27, %cst_42 {dimension_numbers = #tpu.dot_dimension_numbers<[1], [0], [0], [1], [0, 0, 1, 1], [], []>} : vector<16x8xbf16>, vector<8x8xbf16>, vector<16x8xf32> -> vector<16x8xf32>
    %83 = vector.shape_cast %82 : vector<16x8xf32> to vector<2x8x8xf32>
    %c0_43 = arith.constant 0 : index
    %c0_44 = arith.constant 0 : index
    %c0_45 = arith.constant 0 : index
    %84 = vector.load %arg15[%c0_43, %c0_44, %c0_45] : memref<2x8x8xf32, #tpu.memory_space<vmem>>, vector<2x8x8xf32>
    %85 = vector.broadcast %70 : vector<2x8x1xf32> to vector<2x8x8xf32>
    %86 = arith.mulf %85, %84 : vector<2x8x8xf32>
    %87 = arith.addf %86, %83 : vector<2x8x8xf32>
    %c0_46 = arith.constant 0 : index
    %c0_47 = arith.constant 0 : index
    %c0_48 = arith.constant 0 : index
    %88 = vector.load %arg15[%c0_46, %c0_47, %c0_48] : memref<2x8x8xf32, #tpu.memory_space<vmem>>, vector<2x8x8xf32>
    tpu.vector_store %arg15[%c0_46, %c0_47, %c0_48], %87 {strides = array<i32>} : memref<2x8x8xf32, #tpu.memory_space<vmem>>, vector<2x8x8xf32>,
    %c0_49 = arith.constant 0 : index
    %c0_50 = arith.constant 0 : index
    %c0_51 = arith.constant 0 : index
    %89 = vector.load %arg13[%c0_49, %c0_50, %c0_51] : memref<2x8x1xf32, #tpu.memory_space<vmem>>, vector<2x8x1xf32>
    tpu.vector_store %arg13[%c0_49, %c0_50, %c0_51], %68 {strides = array<i32>} : memref<2x8x1xf32, #tpu.memory_space<vmem>>, vector<2x8x1xf32>,
    %c1_i32 = arith.constant 1 : i32
    %90 = arith.cmpi eq, %arg3, %c1_i32 : i32
    %91 = arith.extui %90 : i1 to i32
    %c0_i32_52 = arith.constant 0 : i32
    %92 = arith.cmpi ne, %91, %c0_i32_52 : i32
    scf.if %92 {
      %c0_56 = arith.constant 0 : index
      %c0_57 = arith.constant 0 : index
      %c0_58 = arith.constant 0 : index
      %98 = vector.load %arg15[%c0_56, %c0_57, %c0_58] : memref<2x8x8xf32, #tpu.memory_space<vmem>>, vector<2x8x8xf32>
      %c0_59 = arith.constant 0 : index
      %c0_60 = arith.constant 0 : index
      %c0_61 = arith.constant 0 : index
      %99 = vector.load %arg14[%c0_59, %c0_60, %c0_61] : memref<2x8x1xf32, #tpu.memory_space<vmem>>, vector<2x8x1xf32>
      %100 = vector.broadcast %99 : vector<2x8x1xf32> to vector<2x8x8xf32>
      %101 = arith.divf %98, %100 : vector<2x8x8xf32>
      %102 = vector.extract_strided_slice %101 {offsets = [0, 0, 0], sizes = [1, 8, 8], strides = [1, 1, 1]} : vector<2x8x8xf32> to vector<1x8x8xf32>
      %103 = vector.shape_cast %102 : vector<1x8x8xf32> to vector<8x8xf32>
      %104 = arith.truncf %103 : vector<8x8xf32> to vector<8x8xbf16>
      %c0_62 = arith.constant 0 : index
      %c0_63 = arith.constant 0 : index
      %105 = vector.load %arg16[%c0_62, %c0_63] : memref<8x16xbf16, #tpu.memory_space<vmem>>, vector<8x8xbf16>
      tpu.vector_store %arg16[%c0_62, %c0_63], %104 {strides = array<i32>} : memref<8x16xbf16, #tpu.memory_space<vmem>>, vector<8x8xbf16>,
      %106 = vector.extract_strided_slice %101 {offsets = [1, 0, 0], sizes = [1, 8, 8], strides = [1, 1, 1]} : vector<2x8x8xf32> to vector<1x8x8xf32>
      %107 = vector.shape_cast %106 : vector<1x8x8xf32> to vector<8x8xf32>
      %108 = arith.truncf %107 : vector<8x8xf32> to vector<8x8xbf16>
      %c0_64 = arith.constant 0 : index
      %c8 = arith.constant 8 : index
      %109 = vector.load %arg16[%c0_64, %c8] : memref<8x16xbf16, #tpu.memory_space<vmem>>, vector<8x8xbf16>
      tpu.vector_store %arg16[%c0_64, %c8], %108 {strides = array<i32>} : memref<8x16xbf16, #tpu.memory_space<vmem>>, vector<8x8xbf16>,
      %c0_65 = arith.constant 0 : index
      %c0_66 = arith.constant 0 : index
      %110 = vector.load %arg17[%c0_65, %c0_66] : memref<8x32xf32, #tpu.memory_space<vmem>>, vector<8x32xf32>
      %c0_67 = arith.constant 0 : index
      %c0_68 = arith.constant 0 : index
      %111 = vector.load %arg16[%c0_67, %c0_68] : memref<8x16xbf16, #tpu.memory_space<vmem>>, vector<8x16xbf16>
      %c0_69 = arith.constant 0 : index
      %c0_70 = arith.constant 0 : index
      %112 = vector.load %arg7[%c0_69, %c0_70] : memref<16x32xbf16, #tpu.memory_space<vmem>>, vector<16x32xbf16>
      %cst_71 = arith.constant dense<0.000000e+00> : vector<8x32xf32>
      %113 = tpu.matmul %111, %112, %cst_71 {dimension_numbers = #tpu.dot_dimension_numbers<[1], [0], [0], [1], [0, 0, 1, 1], [], []>} : vector<8x16xbf16>, vector<16x32xbf16>, vector<8x32xf32> -> vector<8x32xf32>
      %114 = arith.addf %110, %113 : vector<8x32xf32>
      %c0_72 = arith.constant 0 : index
      %c0_73 = arith.constant 0 : index
      %115 = vector.load %arg17[%c0_72, %c0_73] : memref<8x32xf32, #tpu.memory_space<vmem>>, vector<8x32xf32>
      tpu.vector_store %arg17[%c0_72, %c0_73], %114 {strides = array<i32>} : memref<8x32xf32, #tpu.memory_space<vmem>>, vector<8x32xf32>,
    } else {
    }
    %c1_i32_53 = arith.constant 1 : i32
    %93 = arith.cmpi eq, %arg2, %c1_i32_53 : i32
    %c1_i32_54 = arith.constant 1 : i32
    %94 = arith.cmpi eq, %arg3, %c1_i32_54 : i32
    %95 = arith.andi %93, %94 : i1
    %96 = arith.extui %95 : i1 to i32
    %c0_i32_55 = arith.constant 0 : i32
    %97 = arith.cmpi ne, %96, %c0_i32_55 : i32
    scf.if %97 {
      %c0_56 = arith.constant 0 : index
      %c0_57 = arith.constant 0 : index
      %98 = vector.load %arg17[%c0_56, %c0_57] : memref<8x32xf32, #tpu.memory_space<vmem>>, vector<8x32xf32>
      %c0_58 = arith.constant 0 : index
      %c0_59 = arith.constant 0 : index
      %c0_60 = arith.constant 0 : index
      %99 = vector.load %arg12[%c0_58, %c0_59, %c0_60] : memref<1x8x32xf32, #tpu.memory_space<vmem>>, vector<1x8x32xf32>
      %100 = vector.shape_cast %99 : vector<1x8x32xf32> to vector<8x32xf32>
      %101 = vector.shape_cast %98 : vector<8x32xf32> to vector<1x8x32xf32>
      tpu.vector_store %arg12[%c0_58, %c0_59, %c0_60], %101 {strides = array<i32>} : memref<1x8x32xf32, #tpu.memory_space<vmem>>, vector<1x8x32xf32>,
    } else {
    }
    return
  }
  func.func @transform_0(%arg0: i32, %arg1: i32, %arg2: i32, %arg3: i32) -> (i32, i32, i32, i32, i32) {
    %c0_i32 = arith.constant 0 : i32
    %c0_i32_0 = arith.constant 0 : i32
    %c0_i32_1 = arith.constant 0 : i32
    return %arg0, %arg2, %c0_i32, %arg1, %c0_i32_0 : i32, i32, i32, i32, i32
  }
  func.func @transform_1(%arg0: i32, %arg1: i32, %arg2: i32, %arg3: i32) -> (i32, i32, i32) {
    %c0_i32 = arith.constant 0 : i32
    %c0_i32_0 = arith.constant 0 : i32
    return %arg0, %arg3, %c0_i32 : i32, i32, i32
  }
  func.func @transform_2(%arg0: i32, %arg1: i32, %arg2: i32, %arg3: i32) -> (i32, i32, i32) {
    %c0_i32 = arith.constant 0 : i32
    %c0_i32_0 = arith.constant 0 : i32
    %c0_i32_1 = arith.constant 0 : i32
    return %arg2, %c0_i32, %c0_i32_0 : i32, i32, i32
  }
  func.func @transform_3(%arg0: i32, %arg1: i32, %arg2: i32, %arg3: i32) -> (i32, i32) {
    %c0_i32 = arith.constant 0 : i32
    %c0_i32_0 = arith.constant 0 : i32
    return %arg2, %c0_i32 : i32, i32
  }
  func.func @transform_4(%arg0: i32, %arg1: i32, %arg2: i32, %arg3: i32) -> (i32, i32, i32) {
    %c0_i32 = arith.constant 0 : i32
    %c0_i32_0 = arith.constant 0 : i32
    return %arg0, %arg1, %c0_i32 : i32, i32, i32
  }
  func.func @transform_5(%arg0: i32, %arg1: i32, %arg2: i32, %arg3: i32) -> (i32, i32, i32) {
    %c0_i32 = arith.constant 0 : i32
    %c0_i32_0 = arith.constant 0 : i32
    return %arg0, %arg1, %c0_i32 : i32, i32, i32
  }
  func.func @transform_6(%arg0: i32, %arg1: i32, %arg2: i32, %arg3: i32) -> (i32, i32, i32) {
    %c0_i32 = arith.constant 0 : i32
    %c0_i32_0 = arith.constant 0 : i32
    return %arg0, %arg3, %c0_i32 : i32, i32, i32
  }
  func.func @transform_7(%arg0: i32, %arg1: i32, %arg2: i32, %arg3: i32) -> (i32, i32, i32) {
    %c0_i32 = arith.constant 0 : i32
    %c0_i32_0 = arith.constant 0 : i32
    return %arg0, %arg3, %c0_i32 : i32, i32, i32
  }
  func.func @transform_8(%arg0: i32, %arg1: i32, %arg2: i32, %arg3: i32) -> (i32, i32, i32) {
    %c0_i32 = arith.constant 0 : i32
    %c0_i32_0 = arith.constant 0 : i32
    return %arg0, %arg1, %c0_i32 : i32, i32, i32
  }
}

</mosaic_0001>

<llo_original>
// kernel: internlm3_attention_forward.1
$region0: #{internlm3_attention_forward.1}
  #allocation0 [shape = 'u32[]', space=smem, size = 0x4, offset = 0x4, fixed_abs, tag = 'smem constant byte address 0x4 - core index']
  #allocation1 [shape = 'u32[72,128]{1,0:T(1,128)}', space=vmem, size = 0x9000, scoped, tag = 'internal scratch']
  #allocation2 [shape = 'f32[2,8,1]{2,1,0:T(8,128)}', space=vmem, size = 0x2000, scoped, tag = 'scratch operand']
  #allocation3 [shape = 'f32[2,8,1]{2,1,0:T(8,128)}', space=vmem, size = 0x2000, scoped, tag = 'scratch operand']
  #allocation4 [shape = 'f32[2,8,8]{2,1,0:T(8,128)}', space=vmem, size = 0x2000, scoped, tag = 'scratch operand']
  #allocation5 [shape = 'bf16[8,16]{1,0:T(8,128)(2,1)}', space=vmem, size = 0x800, scoped, tag = 'scratch operand']
  #allocation6 [shape = 'f32[8,32]{1,0:T(8,128)}', space=vmem, size = 0x1000, scoped, tag = 'scratch operand']
  %s0 = inlined_call_operand.vmem [shape: f32[2,2,2,16,8], index: 0, kind: input, shape index: {}]
  %s1 = inlined_call_operand.vmem [shape: f32[2,16,32], index: 1, kind: input, shape index: {}]
  %s2 = inlined_call_operand.vmem [shape: bf16[2,32,16], index: 2, kind: input, shape index: {}]
  %s3 = inlined_call_operand.vmem [shape: bf16[32,32], index: 3, kind: input, shape index: {}]
  %s4 = inlined_call_operand.vmem [shape: f32[2,16,8], index: 4, kind: input, shape index: {}, may-alias: {4,6}]
  %s5 = inlined_call_operand.vmem [shape: f32[2,16,8], index: 5, kind: input, shape index: {}, may-alias: {5,7}]
  %s6 = inlined_call_operand.vmem [shape: f32[2,16,8], index: 6, kind: input, shape index: {}, may-alias: {4,6}]
  %s7 = inlined_call_operand.vmem [shape: f32[2,16,8], index: 7, kind: input, shape index: {}, may-alias: {5,7}]
  %s8 = inlined_call_operand.hbm [shape: f32[2,16,32], index: 8, kind: output, shape index: {}]
  %s9 = sld [smem:[#allocation0]]
  $region119: #{internlm3_attention_forward.1} parent=0
    _
  %s11 = ssub.s32 1, %s9
  %s12 = scalar_select 0, %s11, %s9
  $region1: #{internlm3_attention_forward.1} parent=0
    #allocation7 [shape = 'u8[16384]{0}', space=vmem, size = 0x4000, scoped, tag = 'input window, operand 0']
    #allocation8 [shape = 'u8[8192]{0}', space=vmem, size = 0x2000, scoped, tag = 'output window, operand 0']
    #allocation9 [shape = 's32[2]{0}', space=sflag, size = 0x8, scoped, tag = 'scoped memory for internlm3_attention_forward.1']
    %13 = vsyncpa [#allocation9], 0
    %s14 = scalar_lea.sflag [#allocation9], 1
    %15 = vsyncpa %s14, 0
    loop: start=0, step=1, limit=18
    $region2: #{internlm3_attention_forward.1} parent=1 // loop_pre_header
      _
    $region3: #{internlm3_attention_forward.1} parent=1 // loop_header
      %s17 = sphi 0, %s21
      %p18 = scmp.ge.s32.totalorder %s17, 18
      %s24 = sphi 0, %s50
      %s25 = sphi 0, %s46
      %s26 = sphi 0, %s42
      %s27 = sphi 0, %s38
      %s28 = sphi 0, %s24
      %s29 = sphi 0, %s25
      %s30 = sphi 0, %s26
      %s31 = sphi 0, %s27
      %s32 = sphi 0, %s28
      %s33 = sphi 0, %s29
      %s34 = sphi 0, %s30
      %s35 = sphi 0, %s31
      %s57 = sphi 0, %s59
      %s60 = sphi 0, %s57
      %s61 = sphi 0, %s60
      %s77 = sphi 0, %s61
      %s85 = sphi 0, %s87
      %s88 = sphi 0, %s85
      %s89 = sphi 0, %s88
      %s105 = sphi 0, %s89
      %s111 = sphi 0, %s113
      %s114 = sphi 0, %s111
      %s115 = sphi 0, %s114
      %s131 = sphi 0, %s115
      %s137 = sphi 0, %s139
      %s140 = sphi 0, %s137
      %s141 = sphi 0, %s140
      %s157 = sphi 0, %s141
      %s165 = sphi 0, %s167
      %s168 = sphi 0, %s165
      %s169 = sphi 0, %s168
      %s185 = sphi 0, %s169
      %s193 = sphi 0, %s195
      %s196 = sphi 0, %s193
      %s197 = sphi 0, %s196
      %s213 = sphi 0, %s197
      %s221 = sphi 0, %s223
      %s224 = sphi 0, %s221
      %s225 = sphi 0, %s224
      %s241 = sphi 0, %s225
      %s249 = sphi 0, %s251
      %s252 = sphi 0, %s249
      %s253 = sphi 0, %s252
      %s269 = sphi 0, %s253
      %s277 = sphi 0, %s279
      %s280 = sphi 0, %s277
      %s281 = sphi 0, %s280
      %s297 = sphi 0, %s281
    $region4: #{internlm3_attention_forward.1} parent=1 // loop_header_branch
      %20 = sbr.rel (%p18) target = $region8
    $region5: #{internlm3_attention_forward.1} parent=1 // loop_body
      %s22 = ssub.s32 %s17, 1
      %s23 = ssub.s32 %s17, 2
      %s36 = sadd.s32 1, %s27
      %p37 = scmp.ge.s32.totalorder %s36, 2
      %s38 = scalar_select %p37, 0, %s36
      %s39 = sadd.s32 1, %s26
      %s40 = scalar_select %p37, %s39, %s26
      %p41 = scmp.ge.s32.totalorder %s40, 2
      %s42 = scalar_select %p41, 0, %s40
      %s43 = sadd.s32 1, %s25
      %s44 = scalar_select %p41, %s43, %s25
      %p45 = scmp.ge.s32.totalorder %s44, 2
      %s46 = scalar_select %p45, 0, %s44
      %s47 = sadd.s32 1, %s24
      %s48 = scalar_select %p45, %s47, %s24
      %p49 = scmp.ge.s32.totalorder %s48, 2
      %s50 = scalar_select %p49, 0, %s48
      %s51 = ssub.s32 %s24, %s50
      %s52 = ssub.s32 %s26, %s42
      %s53 = sor.u32 %s51, %s52
      %s54 = ssub.s32 %s25, %s46
      %s55 = sor.u32 %s53, %s54
      %p56 = scmp.eq.s32.totalorder %s55, 0
      %s58 = sadd.s32 %s57, 1
      %s59 = scalar_select %p56, %s57, %s58
      %p62 = pneg %p56
      %p63 = scmp.eq.s32.totalorder %s17, 15
      %p64 = por %p62, %p63
      %p65 = scmp.ne.s32.totalorder %s57, %s60
      %p66 = scmp.eq.s32.totalorder %s17, 0
      %p67 = por %p65, %p66
      %p68 = scmp.ne.s32.totalorder %s57, %s60
      %p69 = scmp.eq.s32.totalorder %s22, 15
      %p70 = por %p68, %p69
      %p71 = scmp.ne.s32.totalorder %s60, %s61
      %p72 = scmp.eq.s32.totalorder %s22, 0
      %p73 = por %p71, %p72
      %p74 = scmp.ne.s32.totalorder %s60, %s61
      %p75 = scmp.eq.s32.totalorder %s23, 15
      %p76 = por %p74, %p75
      %p78 = scmp.ne.s32.totalorder %s61, %s77
      %p79 = scmp.eq.s32.totalorder %s23, 0
      %p80 = por %p78, %p79
      %s81 = ssub.s32 %s24, %s50
      %s82 = ssub.s32 %s27, %s38
      %s83 = sor.u32 %s81, %s82
      %p84 = scmp.eq.s32.totalorder %s83, 0
      %s86 = sadd.s32 %s85, 1
      %s87 = scalar_select %p84, %s85, %s86
      %p90 = pneg %p84
      %p91 = scmp.eq.s32.totalorder %s17, 15
      %p92 = por %p90, %p91
      %p93 = scmp.ne.s32.totalorder %s85, %s88
      %p94 = scmp.eq.s32.totalorder %s17, 0
      %p95 = por %p93, %p94
      %p96 = scmp.ne.s32.totalorder %s85, %s88
      %p97 = scmp.eq.s32.totalorder %s22, 15
      %p98 = por %p96, %p97
      %p99 = scmp.ne.s32.totalorder %s88, %s89
      %p100 = scmp.eq.s32.totalorder %s22, 0
      %p101 = por %p99, %p100
      %p102 = scmp.ne.s32.totalorder %s88, %s89
      %p103 = scmp.eq.s32.totalorder %s23, 15
      %p104 = por %p102, %p103
      %p106 = scmp.ne.s32.totalorder %s89, %s105
      %p107 = scmp.eq.s32.totalorder %s23, 0
      %p108 = por %p106, %p107
      %s109 = ssub.s32 %s26, %s42
      %p110 = scmp.eq.s32.totalorder %s109, 0
      %s112 = sadd.s32 %s111, 1
      %s113 = scalar_select %p110, %s111, %s112
      %p116 = pneg %p110
      %p117 = scmp.eq.s32.totalorder %s17, 15
      %p118 = por %p116, %p117
      %p119 = scmp.ne.s32.totalorder %s111, %s114
      %p120 = scmp.eq.s32.totalorder %s17, 0
      %p121 = por %p119, %p120
      %p122 = scmp.ne.s32.totalorder %s111, %s114
      %p123 = scmp.eq.s32.totalorder %s22, 15
      %p124 = por %p122, %p123
      %p125 = scmp.ne.s32.totalorder %s114, %s115
      %p126 = scmp.eq.s32.totalorder %s22, 0
      %p127 = por %p125, %p126
      %p128 = scmp.ne.s32.totalorder %s114, %s115
      %p129 = scmp.eq.s32.totalorder %s23, 15
      %p130 = por %p128, %p129
      %p132 = scmp.ne.s32.totalorder %s115, %s131
      %p133 = scmp.eq.s32.totalorder %s23, 0
      %p134 = por %p132, %p133
      %s135 = ssub.s32 %s26, %s42
      %p136 = scmp.eq.s32.totalorder %s135, 0
      %s138 = sadd.s32 %s137, 1
      %s139 = scalar_select %p136, %s137, %s138
      %p142 = pneg %p136
      %p143 = scmp.eq.s32.totalorder %s17, 15
      %p144 = por %p142, %p143
      %p145 = scmp.ne.s32.totalorder %s137, %s140
      %p146 = scmp.eq.s32.totalorder %s17, 0
      %p147 = por %p145, %p146
      %p148 = scmp.ne.s32.totalorder %s137, %s140
      %p149 = scmp.eq.s32.totalorder %s22, 15
      %p150 = por %p148, %p149
      %p151 = scmp.ne.s32.totalorder %s140, %s141
      %p152 = scmp.eq.s32.totalorder %s22, 0
      %p153 = por %p151, %p152
      %p154 = scmp.ne.s32.totalorder %s140, %s141
      %p155 = scmp.eq.s32.totalorder %s23, 15
      %p156 = por %p154, %p155
      %p158 = scmp.ne.s32.totalorder %s141, %s157
      %p159 = scmp.eq.s32.totalorder %s23, 0
      %p160 = por %p158, %p159
      %s161 = ssub.s32 %s24, %s50
      %s162 = ssub.s32 %s25, %s46
      %s163 = sor.u32 %s161, %s162
      %p164 = scmp.eq.s32.totalorder %s163, 0
      %s166 = sadd.s32 %s165, 1
      %s167 = scalar_select %p164, %s165, %s166
      %p170 = pneg %p164
      %p171 = scmp.eq.s32.totalorder %s17, 15
      %p172 = por %p170, %p171
      %p173 = scmp.ne.s32.totalorder %s165, %s168
      %p174 = scmp.eq.s32.totalorder %s17, 0
      %p175 = por %p173, %p174
      %p176 = scmp.ne.s32.totalorder %s165, %s168
      %p177 = scmp.eq.s32.totalorder %s22, 15
      %p178 = por %p176, %p177
      %p179 = scmp.ne.s32.totalorder %s168, %s169
      %p180 = scmp.eq.s32.totalorder %s22, 0
      %p181 = por %p179, %p180
      %p182 = scmp.ne.s32.totalorder %s168, %s169
      %p183 = scmp.eq.s32.totalorder %s23, 15
      %p184 = por %p182, %p183
      %p186 = scmp.ne.s32.totalorder %s169, %s185
      %p187 = scmp.eq.s32.totalorder %s23, 0
      %p188 = por %p186, %p187
      %s189 = ssub.s32 %s24, %s50
      %s190 = ssub.s32 %s25, %s46
      %s191 = sor.u32 %s189, %s190
      %p192 = scmp.eq.s32.totalorder %s191, 0
      %s194 = sadd.s32 %s193, 1
      %s195 = scalar_select %p192, %s193, %s194
      %p198 = pneg %p192
      %p199 = scmp.eq.s32.totalorder %s17, 15
      %p200 = por %p198, %p199
      %p201 = scmp.ne.s32.totalorder %s193, %s196
      %p202 = scmp.eq.s32.totalorder %s17, 0
      %p203 = por %p201, %p202
      %p204 = scmp.ne.s32.totalorder %s193, %s196
      %p205 = scmp.eq.s32.totalorder %s22, 15
      %p206 = por %p204, %p205
      %p207 = scmp.ne.s32.totalorder %s196, %s197
      %p208 = scmp.eq.s32.totalorder %s22, 0
      %p209 = por %p207, %p208
      %p210 = scmp.ne.s32.totalorder %s196, %s197
      %p211 = scmp.eq.s32.totalorder %s23, 15
      %p212 = por %p210, %p211
      %p214 = scmp.ne.s32.totalorder %s197, %s213
      %p215 = scmp.eq.s32.totalorder %s23, 0
      %p216 = por %p214, %p215
      %s217 = ssub.s32 %s24, %s50
      %s218 = ssub.s32 %s27, %s38
      %s219 = sor.u32 %s217, %s218
      %p220 = scmp.eq.s32.totalorder %s219, 0
      %s222 = sadd.s32 %s221, 1
      %s223 = scalar_select %p220, %s221, %s222
      %p226 = pneg %p220
      %p227 = scmp.eq.s32.totalorder %s17, 15
      %p228 = por %p226, %p227
      %p229 = scmp.ne.s32.totalorder %s221, %s224
      %p230 = scmp.eq.s32.totalorder %s17, 0
      %p231 = por %p229, %p230
      %p232 = scmp.ne.s32.totalorder %s221, %s224
      %p233 = scmp.eq.s32.totalorder %s22, 15
      %p234 = por %p232, %p233
      %p235 = scmp.ne.s32.totalorder %s224, %s225
      %p236 = scmp.eq.s32.totalorder %s22, 0
      %p237 = por %p235, %p236
      %p238 = scmp.ne.s32.totalorder %s224, %s225
      %p239 = scmp.eq.s32.totalorder %s23, 15
      %p240 = por %p238, %p239
      %p242 = scmp.ne.s32.totalorder %s225, %s241
      %p243 = scmp.eq.s32.totalorder %s23, 0
      %p244 = por %p242, %p243
      %s245 = ssub.s32 %s24, %s50
      %s246 = ssub.s32 %s27, %s38
      %s247 = sor.u32 %s245, %s246
      %p248 = scmp.eq.s32.totalorder %s247, 0
      %s250 = sadd.s32 %s249, 1
      %s251 = scalar_select %p248, %s249, %s250
      %p254 = pneg %p248
      %p255 = scmp.eq.s32.totalorder %s17, 15
      %p256 = por %p254, %p255
      %p257 = scmp.ne.s32.totalorder %s249, %s252
      %p258 = scmp.eq.s32.totalorder %s17, 0
      %p259 = por %p257, %p258
      %p260 = scmp.ne.s32.totalorder %s249, %s252
      %p261 = scmp.eq.s32.totalorder %s22, 15
      %p262 = por %p260, %p261
      %p263 = scmp.ne.s32.totalorder %s252, %s253
      %p264 = scmp.eq.s32.totalorder %s22, 0
      %p265 = por %p263, %p264
      %p266 = scmp.ne.s32.totalorder %s252, %s253
      %p267 = scmp.eq.s32.totalorder %s23, 15
      %p268 = por %p266, %p267
      %p270 = scmp.ne.s32.totalorder %s253, %s269
      %p271 = scmp.eq.s32.totalorder %s23, 0
      %p272 = por %p270, %p271
      %s273 = ssub.s32 %s24, %s50
      %s274 = ssub.s32 %s25, %s46
      %s275 = sor.u32 %s273, %s274
      %p276 = scmp.eq.s32.totalorder %s275, 0
      %s278 = sadd.s32 %s277, 1
      %s279 = scalar_select %p276, %s277, %s278
      %p282 = pneg %p276
      %p283 = scmp.eq.s32.totalorder %s17, 15
      %p284 = por %p282, %p283
      %p285 = scmp.ne.s32.totalorder %s277, %s280
      %p286 = scmp.eq.s32.totalorder %s17, 0
      %p287 = por %p285, %p286
      %p288 = scmp.ne.s32.totalorder %s277, %s280
      %p289 = scmp.eq.s32.totalorder %s22, 15
      %p290 = por %p288, %p289
      %p291 = scmp.ne.s32.totalorder %s280, %s281
      %p292 = scmp.eq.s32.totalorder %s22, 0
      %p293 = por %p291, %p292
      %p294 = scmp.ne.s32.totalorder %s280, %s281
      %p295 = scmp.eq.s32.totalorder %s23, 15
      %p296 = por %p294, %p295
      %p298 = scmp.ne.s32.totalorder %s281, %s297
      %p299 = scmp.eq.s32.totalorder %s23, 0
      %p300 = por %p298, %p299
      %p301 = scmp.le.s32.totalorder 1, %s17
      %p302 = scmp.lt.s32.totalorder %s17, 17
      %p303 = pnand %p301, %p302
      %p304 = pneg %p303
      // Predicated region
      $region9: #{internlm3_attention_forward.1} parent=5 // pred_check
        _
      $region10: #{internlm3_attention_forward.1} parent=5 // pred_check_branch
        %306 = sbr.rel (%p303) target = $region12
      $region11: #{internlm3_attention_forward.1} parent=5 // pred_region
        %s307 = ssub.s32 %s17, 1
      $region12: #{internlm3_attention_forward.1} parent=5 // pred_fallthru
        _
      %p308 = scmp.lt.s32.totalorder %s17, 16
      // Predicated region
      $region13: #{internlm3_attention_forward.1} parent=5 // pred_check
        %p309 = pneg %p308
      $region14: #{internlm3_attention_forward.1} parent=5 // pred_check_branch
        %311 = sbr.rel (%p309) target = $region16
      $region15: #{internlm3_attention_forward.1} parent=5 // pred_region
        // Predicated region
        $region17: #{internlm3_attention_forward.1} parent=15 // pred_check
          %p312 = pneg %p67
        $region18: #{internlm3_attention_forward.1} parent=15 // pred_check_branch
          %314 = sbr.rel (%p312) target = $region20
        $region19: #{internlm3_attention_forward.1} parent=15 // pred_region
          %s315 = sand.u32 %s57, 1
          %s316 = sand.u32 %s57, 1
          %s317 = smul.addr %s316, 16
          %s318 = scalar_lea.vmem [#allocation7], %s317
          %s319 = smul.addr %s26, 4
          %s320 = sadd.s32 %s25, %s319
          %s321 = smul.addr %s24, 8
          %s322 = sadd.s32 %s320, %s321
          %s323 = smul.addr %s322, 8
          %s324 = scalar_lea.vmem %s0, %s323
          // Predicated region
          $region21: #{internlm3_attention_forward.1} parent=19 // pred_check
            _
          $region22: #{internlm3_attention_forward.1} parent=19 // pred_check_branch
            %326 = sbr.rel (0) target = $region24
          $region23: #{internlm3_attention_forward.1} parent=19 // pred_region
            // Predicated region
            $region25: #{internlm3_attention_forward.1} parent=23 // pred_check
              _
            $region26: #{internlm3_attention_forward.1} parent=23 // pred_check_branch
              %328 = sbr.rel (0) target = $region28
            $region27: #{internlm3_attention_forward.1} parent=23 // pred_region
              // Predicated region
              $region40: #{internlm3_attention_forward.1} parent=27 // pred_check
                _
              $region41: #{internlm3_attention_forward.1} parent=27 // pred_check_branch
                %346 = sbr.rel (0) target = $region43
              $region42: #{internlm3_attention_forward.1} parent=27 // pred_region
                loop: start=0, step=1, limit=1
                $region44: #{internlm3_attention_forward.1} parent=42 // loop_pre_header
                  _
                $region45: #{internlm3_attention_forward.1} parent=42 // loop_header
                  %s348 = sphi 0, %s352
                  %p349 = scmp.ge.s32.totalorder %s348, 1
                  %s353 = sphi %s324, %s324
                  %s354 = sphi %s318, %s318
                $region46: #{internlm3_attention_forward.1} parent=42 // loop_header_branch
                  %351 = sbr.rel (%p349) target = $region50
                $region47: #{internlm3_attention_forward.1} parent=42 // loop_body
                  %v355 = vld [vmem:[%s353] sm:$0xff]
                  %356 = vst [vmem:[%s354] sm:$0xff] %v355
                  %v357 = vld [vmem:[%s353 + $0x10] sm:$0xff]
                  %358 = vst [vmem:[%s354 + $0x8] sm:$0xff] %v357
                $region48: #{internlm3_attention_forward.1} parent=42 // loop_footer
                  %s352 = sadd.s32 1, %s348
                $region49: #{internlm3_attention_forward.1} parent=42 // loop_footer_branch
                  %347 = sbr.rel target = $region45
                $region50: #{internlm3_attention_forward.1} parent=42 // loop_exit
                  _
              $region43: #{internlm3_attention_forward.1} parent=27 // pred_fallthru
                _
              // Predicated region
              $region51: #{internlm3_attention_forward.1} parent=27 // pred_check
                _
              $region52: #{internlm3_attention_forward.1} parent=27 // pred_check_branch
                %360 = sbr.rel target = $region54
              $region53: #{internlm3_attention_forward.1} parent=27 // pred_region
                _
              $region54: #{internlm3_attention_forward.1} parent=27 // pred_fallthru
                _
            $region28: #{internlm3_attention_forward.1} parent=23 // pred_fallthru
              _
            // Predicated region
            $region29: #{internlm3_attention_forward.1} parent=23 // pred_check
              _
            $region30: #{internlm3_attention_forward.1} parent=23 // pred_check_branch
              %330 = sbr.rel target = $region32
            $region31: #{internlm3_attention_forward.1} parent=23 // pred_region
              %s332 = ssub.s32 256, 1
              loop: start=0, step=1, limit=1
              $region33: #{internlm3_attention_forward.1} parent=31 // loop_pre_header
                _
              $region34: #{internlm3_attention_forward.1} parent=31 // loop_header
                %s334 = sphi 0, %s338
                %p335 = scmp.ge.s32.totalorder %s334, 1
                %s339 = sphi %s324, %s324
                %s340 = sphi %s318, %s318
              $region35: #{internlm3_attention_forward.1} parent=31 // loop_header_branch
                %337 = sbr.rel (%p335) target = $region39
              $region36: #{internlm3_attention_forward.1} parent=31 // loop_body
                %v341 = vld [vmem:[%s339] sm:%s332]
                %342 = vst [vmem:[%s340] sm:%s332] %v341
                %v343 = vld [vmem:[%s339 + $0x10] sm:%s332]
                %344 = vst [vmem:[%s340 + $0x8] sm:%s332] %v343
              $region37: #{internlm3_attention_forward.1} parent=31 // loop_footer
                %s338 = sadd.s32 1, %s334
              $region38: #{internlm3_attention_forward.1} parent=31 // loop_footer_branch
                %333 = sbr.rel target = $region34
              $region39: #{internlm3_attention_forward.1} parent=31 // loop_exit
                _
            $region32: #{internlm3_attention_forward.1} parent=23 // pred_fallthru
              _
          $region24: #{internlm3_attention_forward.1} parent=19 // pred_fallthru
            _
          %361 = vnop
        $region20: #{internlm3_attention_forward.1} parent=15 // pred_fallthru
          _
        // Predicated region
        $region55: #{internlm3_attention_forward.1} parent=15 // pred_check
          %p362 = pneg %p95
        $region56: #{internlm3_attention_forward.1} parent=15 // pred_check_branch
          %364 = sbr.rel (%p362) target = $region58
        $region57: #{internlm3_attention_forward.1} parent=15 // pred_region
          %p365 = scmp.lt.s32.totalorder %s24, 1
          %s366 = scalar_select %p365, %s24, 1
          %p367 = scmp.lt.s32.totalorder %s27, 1
          %s368 = scalar_select %p367, %s27, 1
          %s369 = smul.addr %s366, 2
          %s370 = sadd.s32 %s368, %s369
          %s371 = smul.addr %s370, 8
          %s372 = scalar_lea.vmem %s1, %s371
        $region58: #{internlm3_attention_forward.1} parent=15 // pred_fallthru
          _
        // Predicated region
        $region59: #{internlm3_attention_forward.1} parent=15 // pred_check
          %p373 = pneg %p121
        $region60: #{internlm3_attention_forward.1} parent=15 // pred_check_branch
          %375 = sbr.rel (%p373) target = $region62
        $region61: #{internlm3_attention_forward.1} parent=15 // pred_region
          %p376 = scmp.lt.s32.totalorder %s26, 1
          %s377 = scalar_select %p376, %s26, 1
          %s378 = smul.addr %s377, 4
          %s379 = smul.addr %s378, 4
          %s380 = scalar_lea.vmem %s2, %s379
        $region62: #{internlm3_attention_forward.1} parent=15 // pred_fallthru
          _
        // Predicated region
        $region63: #{internlm3_attention_forward.1} parent=15 // pred_check
          %p381 = pneg %p147
        $region64: #{internlm3_attention_forward.1} parent=15 // pred_check_branch
          %383 = sbr.rel (%p381) target = $region66
        $region65: #{internlm3_attention_forward.1} parent=15 // pred_region
          %s384 = smul.u32 2, %s26
          %p385 = scmp.lt.s32.totalorder %s384, 3
          %s386 = scalar_select %p385, %s384, 3
          %s387 = smul.addr %s386, 4
          %s388 = scalar_lea.vmem %s3, %s387
          %s389 = smul.u32 2, %s26
        $region66: #{internlm3_attention_forward.1} parent=15 // pred_fallthru
          _
        // Predicated region
        $region67: #{internlm3_attention_forward.1} parent=15 // pred_check
          %p390 = pneg %p175
        $region68: #{internlm3_attention_forward.1} parent=15 // pred_check_branch
          %392 = sbr.rel (%p390) target = $region70
        $region69: #{internlm3_attention_forward.1} parent=15 // pred_region
          %p393 = scmp.lt.s32.totalorder %s24, 1
          %s394 = scalar_select %p393, %s24, 1
          %p395 = scmp.lt.s32.totalorder %s25, 1
          %s396 = scalar_select %p395, %s25, 1
          %s397 = smul.addr %s394, 2
          %s398 = sadd.s32 %s396, %s397
          %s399 = smul.addr %s398, 8
          %s400 = scalar_lea.vmem %s4, %s399
        $region70: #{internlm3_attention_forward.1} parent=15 // pred_fallthru
          _
        // Predicated region
        $region71: #{internlm3_attention_forward.1} parent=15 // pred_check
          %p401 = pneg %p203
        $region72: #{internlm3_attention_forward.1} parent=15 // pred_check_branch
          %403 = sbr.rel (%p401) target = $region74
        $region73: #{internlm3_attention_forward.1} parent=15 // pred_region
          %p404 = scmp.lt.s32.totalorder %s24, 1
          %s405 = scalar_select %p404, %s24, 1
          %p406 = scmp.lt.s32.totalorder %s25, 1
          %s407 = scalar_select %p406, %s25, 1
          %s408 = smul.addr %s405, 2
          %s409 = sadd.s32 %s407, %s408
          %s410 = smul.addr %s409, 8
          %s411 = scalar_lea.vmem %s5, %s410
        $region74: #{internlm3_attention_forward.1} parent=15 // pred_fallthru
          _
        // Predicated region
        $region75: #{internlm3_attention_forward.1} parent=15 // pred_check
          %p412 = pneg %p231
        $region76: #{internlm3_attention_forward.1} parent=15 // pred_check_branch
          %414 = sbr.rel (%p412) target = $region78
        $region77: #{internlm3_attention_forward.1} parent=15 // pred_region
          %p415 = scmp.lt.s32.totalorder %s24, 1
          %s416 = scalar_select %p415, %s24, 1
          %p417 = scmp.lt.s32.totalorder %s27, 1
          %s418 = scalar_select %p417, %s27, 1
          %s419 = smul.addr %s416, 2
          %s420 = sadd.s32 %s418, %s419
          %s421 = smul.addr %s420, 8
          %s422 = scalar_lea.vmem %s6, %s421
        $region78: #{internlm3_attention_forward.1} parent=15 // pred_fallthru
          _
        // Predicated region
        $region79: #{internlm3_attention_forward.1} parent=15 // pred_check
          %p423 = pneg %p259
        $region80: #{internlm3_attention_forward.1} parent=15 // pred_check_branch
          %425 = sbr.rel (%p423) target = $region82
        $region81: #{internlm3_attention_forward.1} parent=15 // pred_region
          %p426 = scmp.lt.s32.totalorder %s24, 1
          %s427 = scalar_select %p426, %s24, 1
          %p428 = scmp.lt.s32.totalorder %s27, 1
          %s429 = scalar_select %p428, %s27, 1
          %s430 = smul.addr %s427, 2
          %s431 = sadd.s32 %s429, %s430
          %s432 = smul.addr %s431, 8
          %s433 = scalar_lea.vmem %s7, %s432
        $region82: #{internlm3_attention_forward.1} parent=15 // pred_fallthru
          _
      $region16: #{internlm3_attention_forward.1} parent=5 // pred_fallthru
        _
      %p434 = scmp.le.s32.totalorder 1, %s17
      %p435 = scmp.lt.s32.totalorder %s17, 17
      %p436 = pnand %p434, %p435
      %p437 = pneg %p436
      // Predicated region
      $region83: #{internlm3_attention_forward.1} parent=5 // pred_check
        _
      $region84: #{internlm3_attention_forward.1} parent=5 // pred_check_branch
        %439 = sbr.rel (%p436) target = $region86
      $region85: #{internlm3_attention_forward.1} parent=5 // pred_region
        %s440 = ssub.s32 %s17, 1
        %s441 = sand.u32 %s60, 1
        %s442 = sand.u32 %s60, 1
        %s443 = smul.addr %s442, 16
        %s444 = scalar_lea.vmem [#allocation7], %s443
        // Predicated region
        $region87: #{internlm3_attention_forward.1} parent=85 // pred_check
          %p445 = pneg %p73
        $region88: #{internlm3_attention_forward.1} parent=85 // pred_check_branch
          %447 = sbr.rel (%p445) target = $region90
        $region89: #{internlm3_attention_forward.1} parent=85 // pred_region
          _
        $region90: #{internlm3_attention_forward.1} parent=85 // pred_fallthru
          _
        %s448 = sand.u32 %s60, 1
        %s449 = sand.u32 %s60, 1
        %s450 = smul.addr %s449, 16
        %s451 = scalar_lea.vmem [#allocation7], %s450
        %p452 = pneg %p73
        %p453 = pneg %p70
        %p454 = scmp.lt.s32.totalorder %s28, 1
        %s455 = scalar_select %p454, %s28, 1
        %p456 = scmp.lt.s32.totalorder %s31, 1
        %s457 = scalar_select %p456, %s31, 1
        %s458 = smul.addr %s455, 2
        %s459 = sadd.s32 %s457, %s458
        %s460 = smul.addr %s459, 8
        %s461 = scalar_lea.vmem %s1, %s460
        %p462 = pneg %p101
        %p463 = pneg %p98
        %p464 = scmp.lt.s32.totalorder %s30, 1
        %s465 = scalar_select %p464, %s30, 1
        %s466 = smul.addr %s465, 4
        %s467 = smul.addr %s466, 4
        %s468 = scalar_lea.vmem %s2, %s467
        %p469 = pneg %p127
        %p470 = pneg %p124
        %s471 = smul.u32 2, %s30
        %p472 = scmp.lt.s32.totalorder %s471, 3
        %s473 = scalar_select %p472, %s471, 3
        %s474 = smul.addr %s473, 4
        %s475 = scalar_lea.vmem %s3, %s474
        %p476 = pneg %p153
        %p477 = pneg %p150
        %p478 = scmp.lt.s32.totalorder %s28, 1
        %s479 = scalar_select %p478, %s28, 1
        %p480 = scmp.lt.s32.totalorder %s29, 1
        %s481 = scalar_select %p480, %s29, 1
        %s482 = smul.addr %s479, 2
        %s483 = sadd.s32 %s481, %s482
        %s484 = smul.addr %s483, 8
        %s485 = scalar_lea.vmem %s4, %s484
        %p486 = pneg %p181
        %p487 = pneg %p178
        %p488 = scmp.lt.s32.totalorder %s28, 1
        %s489 = scalar_select %p488, %s28, 1
        %p490 = scmp.lt.s32.totalorder %s29, 1
        %s491 = scalar_select %p490, %s29, 1
        %s492 = smul.addr %s489, 2
        %s493 = sadd.s32 %s491, %s492
        %s494 = smul.addr %s493, 8
        %s495 = scalar_lea.vmem %s5, %s494
        %p496 = pneg %p209
        %p497 = pneg %p206
        %p498 = scmp.lt.s32.totalorder %s28, 1
        %s499 = scalar_select %p498, %s28, 1
        %p500 = scmp.lt.s32.totalorder %s31, 1
        %s501 = scalar_select %p500, %s31, 1
        %s502 = smul.addr %s499, 2
        %s503 = sadd.s32 %s501, %s502
        %s504 = smul.addr %s503, 8
        %s505 = scalar_lea.vmem %s6, %s504
        %p506 = pneg %p237
        %p507 = pneg %p234
        %p508 = scmp.lt.s32.totalorder %s28, 1
        %s509 = scalar_select %p508, %s28, 1
        %p510 = scmp.lt.s32.totalorder %s31, 1
        %s511 = scalar_select %p510, %s31, 1
        %s512 = smul.addr %s509, 2
        %s513 = sadd.s32 %s511, %s512
        %s514 = smul.addr %s513, 8
        %s515 = scalar_lea.vmem %s7, %s514
        %p516 = pneg %p265
        %p517 = pneg %p262
        %p518 = pneg %p293
        %p519 = pneg %p290
        %s520 = sand.u32 %s280, 1
        %s521 = scalar_lea.sflag [#allocation9], %s520
        %s522 = sand.u32 %s280, 1
        %s523 = smul.addr %s522, 8
        %s524 = scalar_lea.vmem [#allocation8], %s523
        %p525 = scmp.lt.s32.totalorder %s28, 1
        %s526 = scalar_select %p525, %s28, 1
        %p527 = scmp.lt.s32.totalorder %s31, 1
        %s528 = scalar_select %p527, %s31, 1
        %s529 = smul.addr %s526, 2
        %s530 = sadd.s32 %s528, %s529
        %s531 = smul.addr %s530, 8
        %s532 = scalar_lea.vmem %s1, %s531
        %p533 = scmp.lt.s32.totalorder %s30, 1
        %s534 = scalar_select %p533, %s30, 1
        %s535 = smul.addr %s534, 4
        %s536 = smul.addr %s535, 4
        %s537 = scalar_lea.vmem %s2, %s536
        %s538 = smul.u32 2, %s30
        %p539 = scmp.lt.s32.totalorder %s538, 3
        %s540 = scalar_select %p539, %s538, 3
        %s541 = smul.addr %s540, 4
        %s542 = scalar_lea.vmem %s3, %s541
        %s543 = smul.u32 2, %s30
        %p544 = scmp.lt.s32.totalorder %s28, 1
        %s545 = scalar_select %p544, %s28, 1
        %p546 = scmp.lt.s32.totalorder %s29, 1
        %s547 = scalar_select %p546, %s29, 1
        %s548 = smul.addr %s545, 2
        %s549 = sadd.s32 %s547, %s548
        %s550 = smul.addr %s549, 8
        %s551 = scalar_lea.vmem %s4, %s550
        %p552 = scmp.lt.s32.totalorder %s28, 1
        %s553 = scalar_select %p552, %s28, 1
        %p554 = scmp.lt.s32.totalorder %s29, 1
        %s555 = scalar_select %p554, %s29, 1
        %s556 = smul.addr %s553, 2
        %s557 = sadd.s32 %s555, %s556
        %s558 = smul.addr %s557, 8
        %s559 = scalar_lea.vmem %s5, %s558
        %p560 = scmp.lt.s32.totalorder %s28, 1
        %s561 = scalar_select %p560, %s28, 1
        %p562 = scmp.lt.s32.totalorder %s31, 1
        %s563 = scalar_select %p562, %s31, 1
        %s564 = smul.addr %s561, 2
        %s565 = sadd.s32 %s563, %s564
        %s566 = smul.addr %s565, 8
        %s567 = scalar_lea.vmem %s6, %s566
        %p568 = scmp.lt.s32.totalorder %s28, 1
        %s569 = scalar_select %p568, %s28, 1
        %p570 = scmp.lt.s32.totalorder %s31, 1
        %s571 = scalar_select %p570, %s31, 1
        %s572 = smul.addr %s569, 2
        %s573 = sadd.s32 %s571, %s572
        %s574 = smul.addr %s573, 8
        %s575 = scalar_lea.vmem %s7, %s574
        %p577 = scmp.eq.s32.totalorder %s30, 0
        %p578 = scmp.eq.s32.totalorder %s31, 0
        %p579 = pnand %p577, %p578
        %p580 = pneg %p579
        // Predicated region
        $region91: #{internlm3_attention_forward.1} parent=85 // pred_check
          _
        $region92: #{internlm3_attention_forward.1} parent=85 // pred_check_branch
          %582 = sbr.rel (%p579) target = $region94
        $region93: #{internlm3_attention_forward.1} parent=85 // pred_region
          %vm583 = vcmask 261120
          %584 = vst.msk [vmem:[#allocation6] sm:$0xff] %vm583, 0.0
        $region94: #{internlm3_attention_forward.1} parent=85 // pred_fallthru
          _
        // Predicated region
        $region95: #{internlm3_attention_forward.1} parent=85 // pred_check
          %p585 = pneg %p578
        $region96: #{internlm3_attention_forward.1} parent=85 // pred_check_branch
          %587 = sbr.rel (%p585) target = $region98
        $region97: #{internlm3_attention_forward.1} parent=85 // pred_region
          %vm588 = vcmask 7168
          %589 = vst.msk [vmem:[#allocation2] sm:$0xff] %vm588, -inf
          %590 = vst.msk [vmem:[#allocation2 + $0x8] sm:$0xff] %vm588, -inf
          %591 = vst.msk [vmem:[#allocation3] sm:$0xff] %vm588, 0.0
          %592 = vst.msk [vmem:[#allocation3 + $0x8] sm:$0xff] %vm588, 0.0
          %vm593 = vcmask 64512
          %594 = vst.msk [vmem:[#allocation4] sm:$0xff] %vm593, 0.0
          %595 = vst.msk [vmem:[#allocation4 + $0x8] sm:$0xff] %vm593, 0.0
        $region98: #{internlm3_attention_forward.1} parent=85 // pred_fallthru
          _
        %v596 = vld [vmem:[%s532] sm:$0xff]
        %v597 = vpack.c.bf16 %v596, %v596
        %v598 = vld [vmem:[%s537] sm:$0xf]
        %v599 = vld [vmem:[%s537 + $0x4] sm:$0xf]
        %v600 = vld [vmem:[%s537 + $0x8] sm:$0xf]
        %v601 = vld [vmem:[%s537 + $0xc] sm:$0xf]
        %v606 = vunpack.c.l.b16 %v598
        %v607 = vunpack.c.l.b16 %v599
        %v608 = vunpack.c.l.b16 %v600
        %v609 = vunpack.c.l.b16 %v601
        %v610 = vpack.c.b16 %v607, %v606
        %v611 = vpack.c.b16 %v609, %v608
        %vm614 = vcmask 261120
        %v616 = vsel %vm614, %v597, 0
        %618 = vmatpush.bf16.msra.mxu0 0
        %619 = vmatpush.bf16.msra.mxu0 0
        %620 = vmatpush.bf16.msra.mxu0 0
        %621 = vmatpush.bf16.msra.mxu0 0
        %622 = vmatpush.bf16.msra.mxu0 0
        %623 = vmatpush.bf16.msra.mxu0 0
        %624 = vmatpush.bf16.msra.mxu0 %v611
        %625 = vmatpush.bf16.msra.mxu0 %v610
        %626 = vmatmul.bf16.gmra.mxu0 %v616
        %v627 = vpop.f32.mrf.mxu0
        %v628 = vadd.f32 0.0, %v627
        %v629 = vpop.f32.mrf.mxu0
        %630 = vdwg.mxu0
        %v631 = vld [vmem:[%s567] sm:$0xff]
        %v632 = vld [vmem:[%s575] sm:$0xff]
        %634 = vrot.lane.b32.xlu0 %v628, 124
        %v635 = vpop.permute.xlu0 %634
        %637 = vrot.lane.b32.xlu0 %v628, 4
        %v638 = vpop.permute.xlu0 %637
        %vm640 = vcmask 31744
        %v641 = vsel %vm640, %v635, %v638
        %v642 = vmul.f32 %v628, %v631
        %v643 = vmul.f32 %v641, %v632
        %v644 = vadd.f32 %v642, %v643
        %v645 = vpack.c.bf16 %v644, %v644
        %v646 = vpack.c.bf16 %v628, %v628
        %v647 = vld [vmem:[%s444] sm:$0xff]
        %v648 = vld [vmem:[%s444 + $0x8] sm:$0xff]
        %v649 = vmul.f32 %v647, 0.35355338
        %v650 = vmul.f32 %v648, 0.35355338
        %v651 = vld [vmem:[%s551] sm:$0xff]
        %v652 = vld [vmem:[%s559] sm:$0xff]
        %655 = vrot.lane.b32.xlu0 %v649, 124
        %v656 = vpop.permute.xlu0 %655
        %657 = vrot.lane.b32.xlu0 %v650, 124
        %v658 = vpop.permute.xlu0 %657
        %661 = vrot.lane.b32.xlu0 %v649, 4
        %v662 = vpop.permute.xlu0 %661
        %663 = vrot.lane.b32.xlu0 %v650, 4
        %v664 = vpop.permute.xlu0 %663
        %v667 = vsel %vm640, %v656, %v662
        %v668 = vsel %vm640, %v658, %v664
        %v669 = vmul.f32 %v649, %v651
        %v670 = vmul.f32 %v650, %v651
        %v671 = vmul.f32 %v667, %v652
        %v672 = vmul.f32 %v668, %v652
        %v673 = vadd.f32 %v669, %v671
        %v674 = vadd.f32 %v670, %v672
        %v675 = vpack.c.bf16 %v674, %v673
        %vm676 = vcmask 64512
        %v678 = vsel %vm676, %v675, 0
        %v681 = vsel %vm676, %v645, 0
        %683 = vmatpush.bf16.xpose.msra.mxu0 0
        %684 = vmatpush.bf16.xpose.msra.mxu0 0
        %685 = vmatpush.bf16.xpose.msra.mxu0 0
        %686 = vmatpush.bf16.xpose.msra.mxu0 0
        %687 = vmatpush.bf16.xpose.msra.mxu0 0
        %688 = vmatpush.bf16.xpose.msra.mxu0 0
        %689 = vmatpush.bf16.xpose.msra.mxu0 0
        %690 = vmatpush.bf16.xpose.msra.mxu0 %v681
        %691 = vmatmul.bf16.gmra.mxu0 %v678
        %v692 = vpop.f32.mrf.mxu0
        %v693 = vadd.f32 0.0, %v692
        %v694 = vpop.f32.mrf.mxu0
        %v695 = vadd.f32 0.0, %v694
        %696 = vdwg.mxu0
        %s697 = smul.u32 %s29, 8
        %v698 = vlaneseq
        %v699 = vshrl.u32 %v698, 7
        %v700 = vstv %s697
        %v701 = vadd.s32 %v700, %v699
        %s702 = smul.u32 %s31, 8
        %v703 = vlaneseq
        %v704 = vand.u32 %v703, 127
        %v705 = vstv %s702
        %v706 = vadd.s32 %v705, %v704
        %vm707 = vcmp.le.s32.totalorder %v706, %v701
        %v708 = vsel %vm707, 0.0, -1e+30
        %v709 = vadd.f32 %v693, %v708
        %v710 = vadd.f32 %v695, %v708
        %v711 = vld [vmem:[#allocation2] sm:$0xff]
        %v712 = vld [vmem:[#allocation2 + $0x8] sm:$0xff]
        %v713 = vsel %vm676, %v709, -inf
        %714 = vmax.xlane.f32.xlu0 %v713
        %v715 = vpop.xlane.xlu0 %714
        %v716 = vsel %vm676, %v710, -inf
        %717 = vmax.xlane.f32.xlu0 %v716
        %v718 = vpop.xlane.xlu0 %717
        %v719 = vmax.f32 %v711, %v715
        %v720 = vmax.f32 %v712, %v718
        %v721 = vsub.f32 %v711, %v719
        %v722 = vsub.f32 %v712, %v720
        %v723 = vmul.f32 %v721, 1.442695
        %v724 = vpow.pop %v723
        %v725 = vmul.f32 %v722, 1.442695
        %v726 = vpow.pop %v725
        %728 = vset.pattern.permute.xlu0 0
        %729 = vperm.xlu0 %728, %v719
        %v730 = vpop.permute.xlu0 %729
        %733 = vset.pattern.permute.xlu0 0
        %734 = vperm.xlu0 %733, %v720
        %v735 = vpop.permute.xlu0 %734
        %v737 = vsub.f32 %v709, %v730
        %v738 = vsub.f32 %v710, %v735
        %v739 = vmul.f32 %v737, 1.442695
        %v740 = vpow.pop %v739
        %v741 = vmul.f32 %v738, 1.442695
        %v742 = vpow.pop %v741
        %v743 = vld [vmem:[#allocation3] sm:$0xff]
        %v744 = vld [vmem:[#allocation3 + $0x8] sm:$0xff]
        %v745 = vmul.f32 %v724, %v743
        %v746 = vmul.f32 %v726, %v744
        %v747 = vsel %vm676, %v740, 0.0
        %748 = vadd.xlane.f32.xlu0 %v747
        %v749 = vpop.xlane.xlu0 %748
        %v750 = vsel %vm676, %v742, 0.0
        %751 = vadd.xlane.f32.xlu0 %v750
        %v752 = vpop.xlane.xlu0 %751
        %v753 = vadd.f32 %v745, %v749
        %v754 = vadd.f32 %v746, %v752
        %vm755 = vcmask 7168
        %756 = vst.msk [vmem:[#allocation3] sm:$0xff] %vm755, %v753
        %757 = vst.msk [vmem:[#allocation3 + $0x8] sm:$0xff] %vm755, %v754
        %v758 = vpack.c.bf16 %v742, %v740
        %760 = vrot.lane.b32.xlu0 %v646, 120
        %v761 = vpop.permute.xlu0 %760
        %v763 = vsel %vm676, %v758, 0
        %vm765 = vcmask 1043456
        %v767 = vsel %vm765, %v761, 0
        %769 = vmatpush.bf16.msra.mxu0 0
        %770 = vmatpush.bf16.msra.mxu0 0
        %771 = vmatpush.bf16.msra.mxu0 0
        %772 = vmatpush.bf16.msra.mxu0 0
        %773 = vmatpush.bf16.msra.mxu0 0
        %774 = vmatpush.bf16.msra.mxu0 0
        %775 = vmatpush.bf16.msra.mxu0 0
        %776 = vmatpush.bf16.msra.mxu0 %v767
        %777 = vmatmul.bf16.gmra.mxu0 %v763
        %v778 = vpop.f32.mrf.mxu0
        %v779 = vadd.f32 0.0, %v778
        %v780 = vpop.f32.mrf.mxu0
        %v781 = vadd.f32 0.0, %v780
        %782 = vdwg.mxu0
        %v783 = vld [vmem:[#allocation4] sm:$0xff]
        %v784 = vld [vmem:[#allocation4 + $0x8] sm:$0xff]
        %786 = vset.pattern.permute.xlu0 0
        %787 = vperm.xlu0 %786, %v724
        %v788 = vpop.permute.xlu0 %787
        %791 = vset.pattern.permute.xlu0 0
        %792 = vperm.xlu0 %791, %v726
        %v793 = vpop.permute.xlu0 %792
        %v795 = vmul.f32 %v788, %v783
        %v796 = vmul.f32 %v793, %v784
        %v797 = vadd.f32 %v795, %v779
        %v798 = vadd.f32 %v796, %v781
        %799 = vst.msk [vmem:[#allocation4] sm:$0xff] %vm676, %v797
        %800 = vst.msk [vmem:[#allocation4 + $0x8] sm:$0xff] %vm676, %v798
        %801 = vst.msk [vmem:[#allocation2] sm:$0xff] %vm755, %v719
        %802 = vst.msk [vmem:[#allocation2 + $0x8] sm:$0xff] %vm755, %v720
        %p803 = scmp.eq.s32.totalorder %s31, 1
        // Predicated region
        $region99: #{internlm3_attention_forward.1} parent=85 // pred_check
          %p804 = pneg %p803
        $region100: #{internlm3_attention_forward.1} parent=85 // pred_check_branch
          %806 = sbr.rel (%p804) target = $region102
        $region101: #{internlm3_attention_forward.1} parent=85 // pred_region
          %v807 = vld [vmem:[#allocation4] sm:$0xff]
          %v808 = vld [vmem:[#allocation4 + $0x8] sm:$0xff]
          %v809 = vld [vmem:[#allocation3] sm:$0xff]
          %v810 = vld [vmem:[#allocation3 + $0x8] sm:$0xff]
          %812 = vset.pattern.permute.xlu0 0
          %813 = vperm.xlu0 %812, %v809
          %v814 = vpop.permute.xlu0 %813
          %817 = vset.pattern.permute.xlu0 0
          %818 = vperm.xlu0 %817, %v810
          %v819 = vpop.permute.xlu0 %818
          %v821 = vrcp.pop %v814
          %v822 = vmul.f32 %v814, %v821
          %v823 = vsub.f32 1.0, %v822
          %v824 = vmul.f32 %v821, %v823
          %v825 = vadd.f32 %v821, %v824
          %vm826 = vweird.f32 %v814
          %vm827 = vweird.f32 %v821
          %vm828 = vmor %vm826, %vm827
          %v829 = vsel %vm828, %v821, %v825
          %v830 = vand.u32 2147483647, %v814
          %vm831 = vcmp.eq.f32.partialorder %v830, 8.507059e+37
          %v832 = vand.u32 %v814, 2147483648
          %v833 = vor.u32 1.1754944e-38, %v832
          %v834 = vsel %vm831, %v833, %v829
          %v835 = vmul.f32 %v807, %v834
          %v836 = vrcp.pop %v819
          %v837 = vmul.f32 %v819, %v836
          %v838 = vsub.f32 1.0, %v837
          %v839 = vmul.f32 %v836, %v838
          %v840 = vadd.f32 %v836, %v839
          %vm841 = vweird.f32 %v819
          %vm842 = vweird.f32 %v836
          %vm843 = vmor %vm841, %vm842
          %v844 = vsel %vm843, %v836, %v840
          %v845 = vand.u32 2147483647, %v819
          %vm846 = vcmp.eq.f32.partialorder %v845, 8.507059e+37
          %v847 = vand.u32 %v819, 2147483648
          %v848 = vor.u32 1.1754944e-38, %v847
          %v849 = vsel %vm846, %v848, %v844
          %v850 = vmul.f32 %v808, %v849
          %v851 = vpack.c.bf16 %v835, %v835
          %vm852 = vcmask 60416
          %853 = vst.msk [vmem:[#allocation5] sm:$0xf] %vm852, %v851
          %v854 = vpack.c.bf16 %v850, %v850
          %856 = vrot.lane.b32.xlu0 %v854, 8
          %v857 = vpop.permute.xlu0 %856
          %vm859 = vcmask 126016
          %860 = vst.msk [vmem:[#allocation5] sm:$0xf] %vm859, %v857
          %v861 = vld [vmem:[#allocation6] sm:$0xff]
          %v862 = vld [vmem:[#allocation5] sm:$0xf]
          %v863 = vld [vmem:[%s542] sm:$0xf]
          %v864 = vld [vmem:[%s542 + $0x4] sm:$0xf]
          %v867 = vunpack.c.l.b16 %v863
          %v868 = vunpack.c.l.b16 %v864
          %v869 = vpack.c.b16 %v868, %v867
          %vm871 = vcmask 130048
          %v873 = vsel %vm871, %v862, 0
          %875 = vmatpush.bf16.msra.mxu0 0
          %876 = vmatpush.bf16.msra.mxu0 0
          %877 = vmatpush.bf16.msra.mxu0 0
          %878 = vmatpush.bf16.msra.mxu0 0
          %879 = vmatpush.bf16.msra.mxu0 0
          %880 = vmatpush.bf16.msra.mxu0 0
          %881 = vmatpush.bf16.msra.mxu0 0
          %882 = vmatpush.bf16.msra.mxu0 %v869
          %883 = vmatmul.bf16.gmra.mxu0 %v873
          %v884 = vpop.f32.mrf.mxu0
          %v885 = vadd.f32 0.0, %v884
          %v886 = vpop.f32.mrf.mxu0
          %887 = vdwg.mxu0
          %v888 = vadd.f32 %v861, %v885
          %889 = vst.msk [vmem:[#allocation6] sm:$0xff] %vm614, %v888
        $region102: #{internlm3_attention_forward.1} parent=85 // pred_fallthru
          _
        %p890 = scmp.eq.s32.totalorder %s30, 1
        %p891 = pnand %p890, %p803
        %p892 = pneg %p891
        // Predicated region
        $region103: #{internlm3_attention_forward.1} parent=85 // pred_check
          _
        $region104: #{internlm3_attention_forward.1} parent=85 // pred_check_branch
          %894 = sbr.rel (%p891) target = $region106
        $region105: #{internlm3_attention_forward.1} parent=85 // pred_region
          %v895 = vld [vmem:[#allocation6] sm:$0xff]
          %896 = vst.msk [vmem:[%s524] sm:$0xff] %vm614, %v895
        $region106: #{internlm3_attention_forward.1} parent=85 // pred_fallthru
          _
        %s897 = sand.u32 %s280, 1
        %s898 = scalar_lea.sflag [#allocation9], %s897
        %s899 = sand.u32 %s280, 1
        %s900 = smul.addr %s899, 8
        %s901 = scalar_lea.vmem [#allocation8], %s900
        // Predicated region
        $region107: #{internlm3_attention_forward.1} parent=85 // pred_check
          %p902 = pneg %p290
        $region108: #{internlm3_attention_forward.1} parent=85 // pred_check_branch
          %904 = sbr.rel (%p902) target = $region110
        $region109: #{internlm3_attention_forward.1} parent=85 // pred_region
          %906 = vsyncadd %s898, 0
          %s907 = smul.addr %s28, 2
          %s908 = sadd.s32 %s29, %s907
          %s909 = smul.addr %s908, 8
          %s910 = scalar_lea.hbm %s8, %s909
          %s912 = sshll.u32 %s901, 4
          %s913 = int_to_ptr.vmem [resolvable:$true] %s912
          %s914 = sshll.u32 %s910, 4
          %s915 = int_to_ptr.hbm [resolvable:$true] %s914
          %917 = dma.vmem_to_hbm [thread:$0]  %s913, 128, %s915, %s898
        $region110: #{internlm3_attention_forward.1} parent=85 // pred_fallthru
          _
      $region86: #{internlm3_attention_forward.1} parent=5 // pred_fallthru
        _
      %p918 = scmp.le.s32.totalorder 2, %s17
      // Predicated region
      $region111: #{internlm3_attention_forward.1} parent=5 // pred_check
        %p919 = pneg %p918
      $region112: #{internlm3_attention_forward.1} parent=5 // pred_check_branch
        %921 = sbr.rel (%p919) target = $region114
      $region113: #{internlm3_attention_forward.1} parent=5 // pred_region
        %s922 = ssub.s32 %s17, 2
        // Predicated region
        $region115: #{internlm3_attention_forward.1} parent=113 // pred_check
          %p923 = pneg %p296
        $region116: #{internlm3_attention_forward.1} parent=113 // pred_check_branch
          %925 = sbr.rel (%p923) target = $region118
        $region117: #{internlm3_attention_forward.1} parent=113 // pred_region
          %s926 = sand.u32 %s281, 1
          %s927 = scalar_lea.sflag [#allocation9], %s926
          %s928 = sand.u32 %s281, 1
          %s929 = smul.addr %s928, 8
          %s930 = scalar_lea.vmem [#allocation8], %s929
          %932 = dma.done %s927, 128
        $region118: #{internlm3_attention_forward.1} parent=113 // pred_fallthru
          _
      $region114: #{internlm3_attention_forward.1} parent=5 // pred_fallthru
        _
    $region6: #{internlm3_attention_forward.1} parent=1 // loop_footer
      %s21 = sadd.s32 1, %s17
    $region7: #{internlm3_attention_forward.1} parent=1 // loop_footer_branch
      %16 = sbr.rel target = $region3
    $region8: #{internlm3_attention_forward.1} parent=1 // loop_exit
      _
    %933 = vsyncpa [#allocation9], 1
    %s934 = scalar_lea.sflag [#allocation9], 1
    %935 = vsyncpa %s934, 1

</llo_original>
